<compile_context>
chip_gen: v7x
topology: tpu7x:2x2x1
jax: 0.10.0
libtpu: 0.0.40
codegen_flags: <defaults>
</compile_context>

<pallas_src>
import functools

import jax
import jax.numpy as jnp
from jax.experimental import pallas as pl
from jax.experimental.pallas import tpu as pltpu

OFFSET = 1e-6

# Set to jnp.bfloat16 on v6e/v7x once the looser tolerance is acceptable (perf review).
MATMUL_INPUT_DTYPE = jnp.float32


def _round_up(x, m):
    return ((x + m - 1) // m) * m


def _vmem_limit_bytes():
    # ~75% of physical VMEM, capped at 100 MiB (v5e/v6e: 128 MiB -> 96 MiB;
    # v7x: 64 MiB -> 48 MiB).  Conservative fallback if the query is unavailable.
    try:
        phys = pltpu.get_tpu_info().vmem_capacity_bytes
    except Exception:
        phys = 64 * 1024 * 1024
    return min(int(phys) * 3 // 4, 100 * 1024 * 1024)


def _pick_h_block(h, ka, wc_pad, n2, vmem_budget_bytes):
    """Largest h-block (divisor of H, sublane-friendly) whose working set fits VMEM."""
    cands = sorted(
        {d for d in range(1, h + 1) if h % d == 0 and (d % 8 == 0 or d == h)},
        reverse=True)
    for th in cands:
        need = 4 * (2 * th * ka              # A block (double-buffered)
                    + 2 * ka * wc_pad        # resident Toeplitz weight (conservative x2)
                    + 2 * th * wc_pad * n2   # readout weight slab (double-buffered)
                    + 4 * th * wc_pad        # conv / ELU intermediates
                    + 4 * n2)                # accumulator / biases / out block
        if need <= vmem_budget_bytes:
            return th
    return cands[-1]


# -----------------------------------------------------------------------------
# Fused kernel: per grid step (b, hi) it
#   1) runs the "core" (3x3 same-pad conv as ONE lane-dense MXU matmul against a
#      block-Toeplitz weight, + bias + ELU) for th image rows of batch element b,
#   2) contracts the (th, WCp) features with the h-dependent readout weight slabs,
#      accumulating a (1, 2*Np) running sum in VMEM scratch over the hi axis,
#   3) on the last h-block adds the readout bias and applies the per-head
#      nonlinearities (exp -> theta, sigmoid -> q) on static 128-lane slices.
# -----------------------------------------------------------------------------
def fused_zig_kernel(a_ref, m_ref, bc_ref, w_ref, br_ref, out_ref, acc_ref, *, th, n_pad):
    hi = pl.program_id(1)
    nh = pl.num_programs(1)

    @pl.when(hi == 0)
    def _init():
        acc_ref[...] = jnp.zeros_like(acc_ref)

    # core: conv3x3 (width conv folded into the Toeplitz weight, kh folded into the
    # im2col'd contraction) + bias + ELU.  feat never touches HBM.
    z = jnp.dot(a_ref[...], m_ref[...], preferred_element_type=jnp.float32)
    z = z + bc_ref[...]
    feat = jnp.where(z > 0.0, z, jnp.exp(jnp.minimum(z, 0.0)) - 1.0)   # (th, WCp)
    feat = feat.astype(w_ref.dtype)

    # fused readout partial: contract over (h rows of this block, W*Cout lanes).
    acc = acc_ref[...]
    for r in range(th):  # static, small unrolled loop
        acc = acc + jnp.dot(feat[r:r + 1, :], w_ref[r],
                            preferred_element_type=jnp.float32)
    acc_ref[...] = acc

    @pl.when(hi == nh - 1)
    def _finalize():
        zz = acc + br_ref[...]                       # (1, 2*n_pad)
        # lanes [0, n_pad)        -> logtheta head: exp(.) + offset
        # lanes [n_pad, 2*n_pad)  -> q head:        sigmoid(.) * 0.99999 + offset
        out_ref[0, :, :n_pad] = jnp.exp(zz[:, :n_pad]) + OFFSET
        out_ref[0, :, n_pad:] = jax.nn.sigmoid(zz[:, n_pad:]) * 0.99999 + OFFSET


# -----------------------------------------------------------------------------
# Wrapper
# -----------------------------------------------------------------------------
def zig_encoder_forward(x_nchw, params):
    B, Cin, H, W = x_nchw.shape
    Cout = params["wconv"].shape[-1]
    N = params["w_theta"].shape[1]
    WC = W * Cout
    WCp = _round_up(WC, 128)
    Np = _round_up(N, 128)
    N2 = 2 * Np
    ka_raw = 3 * (W + 2) * Cin
    KA = _round_up(ka_raw, 128)

    # glue: NCHW -> NHWC, zero same-padding, im2col over kh only.
    x = jnp.transpose(x_nchw, (0, 2, 3, 1)).astype(jnp.float32)
    xpad = jnp.pad(x, ((0, 0), (1, 1), (1, 1), (0, 0)))                # (B, H+2, W+2, Cin)
    rows = jnp.stack([xpad[:, kh:kh + H] for kh in range(3)], axis=2)  # (B, H, 3, W+2, Cin)
    a = rows.reshape(B * H, ka_raw)
    a = jnp.pad(a, ((0, 0), (0, KA - ka_raw))).astype(MATMUL_INPUT_DTYPE)

    # Block-Toeplitz conv weight (width conv folded in): one one-hot einsum, no
    # sequential dynamic-update-slices.  Depends only on wconv -> precompute once
    # per weight update in a real model.
    kw = jnp.arange(3)[:, None, None]
    wp = jnp.arange(W + 2)[None, :, None]
    wo = jnp.arange(W)[None, None, :]
    shift = (wp == wo + kw).astype(jnp.float32)                        # (3, W+2, W)
    m = jnp.einsum("kpw,akio->apiwo", shift, params["wconv"])          # (3, W+2, Cin, W, Cout)
    m = m.reshape(ka_raw, WC)
    m = jnp.pad(m, ((0, KA - ka_raw), (0, WCp - WC))).astype(MATMUL_INPUT_DTYPE)
    bc = jnp.pad(jnp.tile(params["bconv"], (1, W)), ((0, 0), (0, WCp - WC)))   # (1, WCp)

    # Fused readout weight (H, WCp, 2*Np): logtheta head in lanes [0, Np),
    # q head in lanes [Np, 2*Np) — each head 128-lane aligned.
    w3 = jnp.zeros((H, WCp, N2), jnp.float32)
    w3 = w3.at[:, :WC, :N].set(params["w_theta"].reshape(H, WC, N))
    w3 = w3.at[:, :WC, Np:Np + N].set(params["w_q"].reshape(H, WC, N))
    w3 = w3.astype(MATMUL_INPUT_DTYPE)
    br = jnp.zeros((1, N2), jnp.float32)
    br = br.at[:, :N].set(params["b_theta"])
    br = br.at[:, Np:Np + N].set(params["b_q"])

    vmem_limit = _vmem_limit_bytes()
    th = _pick_h_block(H, KA, WCp, N2, int(vmem_limit * 0.8))
    nh = H // th

    out = pl.pallas_call(
        functools.partial(fused_zig_kernel, th=th, n_pad=Np),
        grid=(B, nh),
        in_specs=[
            pl.BlockSpec((th, KA), lambda b, hi: (b * nh + hi, 0)),      # A rows for (b, h-block)
            pl.BlockSpec((KA, WCp), lambda b, hi: (0, 0)),               # Toeplitz conv weight
            pl.BlockSpec((1, WCp), lambda b, hi: (0, 0)),                # conv bias (tiled over w)
            pl.BlockSpec((th, WCp, N2), lambda b, hi: (hi, 0, 0)),       # readout weight slab
            pl.BlockSpec((1, N2), lambda b, hi: (0, 0)),                 # readout bias
        ],
        out_specs=pl.BlockSpec((1, 1, N2), lambda b, hi: (b, 0, 0)),
        out_shape=jax.ShapeDtypeStruct((B, 1, N2), jnp.float32),
        scratch_shapes=[pltpu.VMEM((1, N2), jnp.float32)],
        compiler_params=pltpu.CompilerParams(
            dimension_semantics=("parallel", "arbitrary"),
            vmem_limit_bytes=vmem_limit,
        ),
    )(a, m, bc, w3, br)

    tq = out.reshape(B, N2)
    theta = tq[:, :N]
    q = tq[:, Np:Np + N]

    # k / loc do not depend on x: plain JAX elementwise on the (1, N) params.
    k = jnp.broadcast_to(jnp.exp(params["logk"]) + 1.1 + OFFSET, (B, N))
    loc = jnp.broadcast_to(jnp.exp(params["logloc"]), (B, N))
    return theta, k, loc, q


# -----------------------------------------------------------------------------
# Pure-JAX reference for verification
# -----------------------------------------------------------------------------
def reference_forward(x_nchw, params):
    B, Cin, H, W = x_nchw.shape
    Cout = params["wconv"].shape[-1]
    N = params["w_theta"].shape[1]
    x = jnp.transpose(x_nchw, (0, 2, 3, 1)).astype(jnp.float32)
    xpad = jnp.pad(x, ((0, 0), (1, 1), (1, 1), (0, 0)))
    acc = jnp.zeros((B, H, W, Cout), jnp.float32)
    for kh in range(3):
        for kw in range(3):
            patch = xpad[:, kh:kh + H, kw:kw + W, :]
            acc = acc + jnp.einsum("bhwi,io->bhwo", patch, params["wconv"][kh, kw])
    acc = acc + params["bconv"][0]
    y = jnp.where(acc > 0.0, acc, jnp.exp(jnp.minimum(acc, 0.0)) - 1.0)
    feat = y.reshape(B, -1)
    logtheta = feat @ params["w_theta"] + params["b_theta"]
    q_raw = feat @ params["w_q"] + params["b_q"]
    theta = jnp.exp(logtheta) + OFFSET
    k = jnp.broadcast_to(jnp.exp(params["logk"]) + 1.1 + OFFSET, (B, N))
    loc = jnp.broadcast_to(jnp.exp(params["logloc"]), (B, N))
    q = jax.nn.sigmoid(q_raw) * 0.99999 + OFFSET
    return theta, k, loc, q


if __name__ == "__main__":
    B, Cin, H, W = 2, 4, 16, 16
    Cout, N = 8, 32            # core output channels, readout outdims (neurons)
    F = H * W * Cout

    key = jax.random.PRNGKey(0)
    k0, k1, k2, k3, k4 = jax.random.split(key, 5)

    x = jax.random.normal(k0, (B, Cin, H, W), jnp.float32)

    params = {
        # core (synthetic conv core)
        "wconv": jax.random.normal(k1, (3, 3, Cin, Cout), jnp.float32) * 0.1,
        "bconv": jnp.zeros((1, Cout), jnp.float32),
        # readout: two image-dependent heads (logtheta, q), NHWC-flattened features
        "w_theta": jax.random.normal(k2, (F, N), jnp.float32) / jnp.sqrt(float(F)),
        "b_theta": jnp.zeros((1, N), jnp.float32),
        "w_q": jax.random.normal(k3, (F, N), jnp.float32) / jnp.sqrt(float(F)),
        "b_q": jnp.zeros((1, N), jnp.float32),
        # shared (non-image-dependent) ZIG parameters
        "logk": jnp.zeros((1, N), jnp.float32),                                        # init_ks=None -> 0.0
        "logloc": (jax.random.uniform(k4, (1, N), jnp.float32) + 1.0) * jnp.log(0.1),  # zero_thresholds=None
    }

    outs = zig_encoder_forward(x, params)
    outs = jax.block_until_ready(outs)

    refs = reference_forward(x, params)
    names = ("theta", "k", "loc", "q")
    for name, o, r in zip(names, outs, refs):
        assert o.shape == (B, N) and o.dtype == jnp.float32, name
        assert bool(jnp.all(jnp.isfinite(o))), name
        assert bool(jnp.allclose(o, r, rtol=1e-3, atol=1e-3)), name

    print("KERNEL_OK")
</pallas_src>

<mosaic_0001>
module attributes {stable_mosaic.version = 11 : i64} {
  func.func @fused_zig_kernel(%arg0: i32, %arg1: i32, %arg2: memref<16x256xf32, #tpu.memory_space<vmem>>, %arg3: memref<256x128xf32, #tpu.memory_space<vmem>>, %arg4: memref<1x128xf32, #tpu.memory_space<vmem>>, %arg5: memref<16x128x256xf32, #tpu.memory_space<vmem>>, %arg6: memref<1x256xf32, #tpu.memory_space<vmem>>, %arg7: memref<1x1x256xf32, #tpu.memory_space<vmem>>, %arg8: memref<1x256xf32, #tpu.memory_space<vmem>>) attributes {dimension_semantics = [#tpu.dimension_semantics<parallel>, #tpu.dimension_semantics<arbitrary>], iteration_bounds = array<i64: 2, 1>, scalar_prefetch = 0 : i64, scratch_operands = 1 : i64, tpu.core_type = #tpu.core_type<tc>, window_params = [{transform_indices = @transform_0, window_bounds = array<i64: 16, 256>}, {pipeline_mode = #tpu.pipeline_mode<synchronous>, transform_indices = @transform_1, window_bounds = array<i64: 256, 128>}, {pipeline_mode = #tpu.pipeline_mode<synchronous>, transform_indices = @transform_2, window_bounds = array<i64: 1, 128>}, {transform_indices = @transform_3, window_bounds = array<i64: 16, 128, 256>}, {pipeline_mode = #tpu.pipeline_mode<synchronous>, transform_indices = @transform_4, window_bounds = array<i64: 1, 256>}, {transform_indices = @transform_5, window_bounds = array<i64: 1, 1, 256>}]} {
    %c0_i32 = arith.constant 0 : i32
    %0 = arith.cmpi eq, %arg1, %c0_i32 : i32
    %1 = arith.extui %0 : i1 to i32
    %c0_i32_0 = arith.constant 0 : i32
    %2 = arith.cmpi ne, %1, %c0_i32_0 : i32
    scf.if %2 {
      %cst_64 = arith.constant 0.000000e+00 : f32
      %102 = vector.broadcast %cst_64 : f32 to vector<1x256xf32>
      %c0_65 = arith.constant 0 : index
      %c0_66 = arith.constant 0 : index
      %103 = vector.load %arg8[%c0_65, %c0_66] : memref<1x256xf32, #tpu.memory_space<vmem>>, vector<1x256xf32>
      tpu.vector_store %arg8[%c0_65, %c0_66], %102 {strides = array<i32>} : memref<1x256xf32, #tpu.memory_space<vmem>>, vector<1x256xf32>,
    } else {
    }
    %c0 = arith.constant 0 : index
    %c0_1 = arith.constant 0 : index
    %3 = vector.load %arg2[%c0, %c0_1] : memref<16x256xf32, #tpu.memory_space<vmem>>, vector<16x256xf32>
    %c0_2 = arith.constant 0 : index
    %c0_3 = arith.constant 0 : index
    %4 = vector.load %arg3[%c0_2, %c0_3] : memref<256x128xf32, #tpu.memory_space<vmem>>, vector<256x128xf32>
    %cst = arith.constant dense<0.000000e+00> : vector<16x128xf32>
    %5 = tpu.matmul %3, %4, %cst {dimension_numbers = #tpu.dot_dimension_numbers<[1], [0], [0], [1], [0, 0, 1, 1], [], []>} : vector<16x256xf32>, vector<256x128xf32>, vector<16x128xf32> -> vector<16x128xf32>
    %c0_4 = arith.constant 0 : index
    %c0_5 = arith.constant 0 : index
    %6 = vector.load %arg4[%c0_4, %c0_5] : memref<1x128xf32, #tpu.memory_space<vmem>>, vector<1x128xf32>
    %7 = vector.broadcast %6 : vector<1x128xf32> to vector<16x128xf32>
    %8 = arith.addf %5, %7 : vector<16x128xf32>
    %cst_6 = arith.constant 0.000000e+00 : f32
    %9 = vector.broadcast %cst_6 : f32 to vector<16x128xf32>
    %10 = arith.cmpf ogt, %8, %9 : vector<16x128xf32>
    %cst_7 = arith.constant 0.000000e+00 : f32
    %11 = vector.broadcast %cst_7 : f32 to vector<16x128xf32>
    %12 = arith.minimumf %8, %11 : vector<16x128xf32>
    %13 = math.exp %12 : vector<16x128xf32>
    %cst_8 = arith.constant 1.000000e+00 : f32
    %14 = vector.broadcast %cst_8 : f32 to vector<16x128xf32>
    %15 = arith.subf %13, %14 : vector<16x128xf32>
    %16 = arith.select %10, %8, %15 : vector<16x128xi1>, vector<16x128xf32>
    %c0_9 = arith.constant 0 : index
    %c0_10 = arith.constant 0 : index
    %17 = vector.load %arg8[%c0_9, %c0_10] : memref<1x256xf32, #tpu.memory_space<vmem>>, vector<1x256xf32>
    %18 = vector.extract_strided_slice %16 {offsets = [0, 0], sizes = [1, 128], strides = [1, 1]} : vector<16x128xf32> to vector<1x128xf32>
    %c0_11 = arith.constant 0 : index
    %c0_12 = arith.constant 0 : index
    %c0_13 = arith.constant 0 : index
    %19 = vector.load %arg5[%c0_11, %c0_12, %c0_13] : memref<16x128x256xf32, #tpu.memory_space<vmem>>, vector<1x128x256xf32>
    %20 = vector.shape_cast %19 : vector<1x128x256xf32> to vector<128x256xf32>
    %cst_14 = arith.constant dense<0.000000e+00> : vector<1x256xf32>
    %21 = tpu.matmul %18, %20, %cst_14 {dimension_numbers = #tpu.dot_dimension_numbers<[1], [0], [0], [1], [0, 0, 1, 1], [], []>} : vector<1x128xf32>, vector<128x256xf32>, vector<1x256xf32> -> vector<1x256xf32>
    %22 = arith.addf %17, %21 : vector<1x256xf32>
    %23 = vector.extract_strided_slice %16 {offsets = [1, 0], sizes = [1, 128], strides = [1, 1]} : vector<16x128xf32> to vector<1x128xf32>
    %c1 = arith.constant 1 : index
    %c0_15 = arith.constant 0 : index
    %c0_16 = arith.constant 0 : index
    %24 = vector.load %arg5[%c1, %c0_15, %c0_16] : memref<16x128x256xf32, #tpu.memory_space<vmem>>, vector<1x128x256xf32>
    %25 = vector.shape_cast %24 : vector<1x128x256xf32> to vector<128x256xf32>
    %cst_17 = arith.constant dense<0.000000e+00> : vector<1x256xf32>
    %26 = tpu.matmul %23, %25, %cst_17 {dimension_numbers = #tpu.dot_dimension_numbers<[1], [0], [0], [1], [0, 0, 1, 1], [], []>} : vector<1x128xf32>, vector<128x256xf32>, vector<1x256xf32> -> vector<1x256xf32>
    %27 = arith.addf %22, %26 : vector<1x256xf32>
    %28 = vector.extract_strided_slice %16 {offsets = [2, 0], sizes = [1, 128], strides = [1, 1]} : vector<16x128xf32> to vector<1x128xf32>
    %c2 = arith.constant 2 : index
    %c0_18 = arith.constant 0 : index
    %c0_19 = arith.constant 0 : index
    %29 = vector.load %arg5[%c2, %c0_18, %c0_19] : memref<16x128x256xf32, #tpu.memory_space<vmem>>, vector<1x128x256xf32>
    %30 = vector.shape_cast %29 : vector<1x128x256xf32> to vector<128x256xf32>
    %cst_20 = arith.constant dense<0.000000e+00> : vector<1x256xf32>
    %31 = tpu.matmul %28, %30, %cst_20 {dimension_numbers = #tpu.dot_dimension_numbers<[1], [0], [0], [1], [0, 0, 1, 1], [], []>} : vector<1x128xf32>, vector<128x256xf32>, vector<1x256xf32> -> vector<1x256xf32>
    %32 = arith.addf %27, %31 : vector<1x256xf32>
    %33 = vector.extract_strided_slice %16 {offsets = [3, 0], sizes = [1, 128], strides = [1, 1]} : vector<16x128xf32> to vector<1x128xf32>
    %c3 = arith.constant 3 : index
    %c0_21 = arith.constant 0 : index
    %c0_22 = arith.constant 0 : index
    %34 = vector.load %arg5[%c3, %c0_21, %c0_22] : memref<16x128x256xf32, #tpu.memory_space<vmem>>, vector<1x128x256xf32>
    %35 = vector.shape_cast %34 : vector<1x128x256xf32> to vector<128x256xf32>
    %cst_23 = arith.constant dense<0.000000e+00> : vector<1x256xf32>
    %36 = tpu.matmul %33, %35, %cst_23 {dimension_numbers = #tpu.dot_dimension_numbers<[1], [0], [0], [1], [0, 0, 1, 1], [], []>} : vector<1x128xf32>, vector<128x256xf32>, vector<1x256xf32> -> vector<1x256xf32>
    %37 = arith.addf %32, %36 : vector<1x256xf32>
    %38 = vector.extract_strided_slice %16 {offsets = [4, 0], sizes = [1, 128], strides = [1, 1]} : vector<16x128xf32> to vector<1x128xf32>
    %c4 = arith.constant 4 : index
    %c0_24 = arith.constant 0 : index
    %c0_25 = arith.constant 0 : index
    %39 = vector.load %arg5[%c4, %c0_24, %c0_25] : memref<16x128x256xf32, #tpu.memory_space<vmem>>, vector<1x128x256xf32>
    %40 = vector.shape_cast %39 : vector<1x128x256xf32> to vector<128x256xf32>
    %cst_26 = arith.constant dense<0.000000e+00> : vector<1x256xf32>
    %41 = tpu.matmul %38, %40, %cst_26 {dimension_numbers = #tpu.dot_dimension_numbers<[1], [0], [0], [1], [0, 0, 1, 1], [], []>} : vector<1x128xf32>, vector<128x256xf32>, vector<1x256xf32> -> vector<1x256xf32>
    %42 = arith.addf %37, %41 : vector<1x256xf32>
    %43 = vector.extract_strided_slice %16 {offsets = [5, 0], sizes = [1, 128], strides = [1, 1]} : vector<16x128xf32> to vector<1x128xf32>
    %c5 = arith.constant 5 : index
    %c0_27 = arith.constant 0 : index
    %c0_28 = arith.constant 0 : index
    %44 = vector.load %arg5[%c5, %c0_27, %c0_28] : memref<16x128x256xf32, #tpu.memory_space<vmem>>, vector<1x128x256xf32>
    %45 = vector.shape_cast %44 : vector<1x128x256xf32> to vector<128x256xf32>
    %cst_29 = arith.constant dense<0.000000e+00> : vector<1x256xf32>
    %46 = tpu.matmul %43, %45, %cst_29 {dimension_numbers = #tpu.dot_dimension_numbers<[1], [0], [0], [1], [0, 0, 1, 1], [], []>} : vector<1x128xf32>, vector<128x256xf32>, vector<1x256xf32> -> vector<1x256xf32>
    %47 = arith.addf %42, %46 : vector<1x256xf32>
    %48 = vector.extract_strided_slice %16 {offsets = [6, 0], sizes = [1, 128], strides = [1, 1]} : vector<16x128xf32> to vector<1x128xf32>
    %c6 = arith.constant 6 : index
    %c0_30 = arith.constant 0 : index
    %c0_31 = arith.constant 0 : index
    %49 = vector.load %arg5[%c6, %c0_30, %c0_31] : memref<16x128x256xf32, #tpu.memory_space<vmem>>, vector<1x128x256xf32>
    %50 = vector.shape_cast %49 : vector<1x128x256xf32> to vector<128x256xf32>
    %cst_32 = arith.constant dense<0.000000e+00> : vector<1x256xf32>
    %51 = tpu.matmul %48, %50, %cst_32 {dimension_numbers = #tpu.dot_dimension_numbers<[1], [0], [0], [1], [0, 0, 1, 1], [], []>} : vector<1x128xf32>, vector<128x256xf32>, vector<1x256xf32> -> vector<1x256xf32>
    %52 = arith.addf %47, %51 : vector<1x256xf32>
    %53 = vector.extract_strided_slice %16 {offsets = [7, 0], sizes = [1, 128], strides = [1, 1]} : vector<16x128xf32> to vector<1x128xf32>
    %c7 = arith.constant 7 : index
    %c0_33 = arith.constant 0 : index
    %c0_34 = arith.constant 0 : index
    %54 = vector.load %arg5[%c7, %c0_33, %c0_34] : memref<16x128x256xf32, #tpu.memory_space<vmem>>, vector<1x128x256xf32>
    %55 = vector.shape_cast %54 : vector<1x128x256xf32> to vector<128x256xf32>
    %cst_35 = arith.constant dense<0.000000e+00> : vector<1x256xf32>
    %56 = tpu.matmul %53, %55, %cst_35 {dimension_numbers = #tpu.dot_dimension_numbers<[1], [0], [0], [1], [0, 0, 1, 1], [], []>} : vector<1x128xf32>, vector<128x256xf32>, vector<1x256xf32> -> vector<1x256xf32>
    %57 = arith.addf %52, %56 : vector<1x256xf32>
    %58 = vector.extract_strided_slice %16 {offsets = [8, 0], sizes = [1, 128], strides = [1, 1]} : vector<16x128xf32> to vector<1x128xf32>
    %c8 = arith.constant 8 : index
    %c0_36 = arith.constant 0 : index
    %c0_37 = arith.constant 0 : index
    %59 = vector.load %arg5[%c8, %c0_36, %c0_37] : memref<16x128x256xf32, #tpu.memory_space<vmem>>, vector<1x128x256xf32>
    %60 = vector.shape_cast %59 : vector<1x128x256xf32> to vector<128x256xf32>
    %cst_38 = arith.constant dense<0.000000e+00> : vector<1x256xf32>
    %61 = tpu.matmul %58, %60, %cst_38 {dimension_numbers = #tpu.dot_dimension_numbers<[1], [0], [0], [1], [0, 0, 1, 1], [], []>} : vector<1x128xf32>, vector<128x256xf32>, vector<1x256xf32> -> vector<1x256xf32>
    %62 = arith.addf %57, %61 : vector<1x256xf32>
    %63 = vector.extract_strided_slice %16 {offsets = [9, 0], sizes = [1, 128], strides = [1, 1]} : vector<16x128xf32> to vector<1x128xf32>
    %c9 = arith.constant 9 : index
    %c0_39 = arith.constant 0 : index
    %c0_40 = arith.constant 0 : index
    %64 = vector.load %arg5[%c9, %c0_39, %c0_40] : memref<16x128x256xf32, #tpu.memory_space<vmem>>, vector<1x128x256xf32>
    %65 = vector.shape_cast %64 : vector<1x128x256xf32> to vector<128x256xf32>
    %cst_41 = arith.constant dense<0.000000e+00> : vector<1x256xf32>
    %66 = tpu.matmul %63, %65, %cst_41 {dimension_numbers = #tpu.dot_dimension_numbers<[1], [0], [0], [1], [0, 0, 1, 1], [], []>} : vector<1x128xf32>, vector<128x256xf32>, vector<1x256xf32> -> vector<1x256xf32>
    %67 = arith.addf %62, %66 : vector<1x256xf32>
    %68 = vector.extract_strided_slice %16 {offsets = [10, 0], sizes = [1, 128], strides = [1, 1]} : vector<16x128xf32> to vector<1x128xf32>
    %c10 = arith.constant 10 : index
    %c0_42 = arith.constant 0 : index
    %c0_43 = arith.constant 0 : index
    %69 = vector.load %arg5[%c10, %c0_42, %c0_43] : memref<16x128x256xf32, #tpu.memory_space<vmem>>, vector<1x128x256xf32>
    %70 = vector.shape_cast %69 : vector<1x128x256xf32> to vector<128x256xf32>
    %cst_44 = arith.constant dense<0.000000e+00> : vector<1x256xf32>
    %71 = tpu.matmul %68, %70, %cst_44 {dimension_numbers = #tpu.dot_dimension_numbers<[1], [0], [0], [1], [0, 0, 1, 1], [], []>} : vector<1x128xf32>, vector<128x256xf32>, vector<1x256xf32> -> vector<1x256xf32>
    %72 = arith.addf %67, %71 : vector<1x256xf32>
    %73 = vector.extract_strided_slice %16 {offsets = [11, 0], sizes = [1, 128], strides = [1, 1]} : vector<16x128xf32> to vector<1x128xf32>
    %c11 = arith.constant 11 : index
    %c0_45 = arith.constant 0 : index
    %c0_46 = arith.constant 0 : index
    %74 = vector.load %arg5[%c11, %c0_45, %c0_46] : memref<16x128x256xf32, #tpu.memory_space<vmem>>, vector<1x128x256xf32>
    %75 = vector.shape_cast %74 : vector<1x128x256xf32> to vector<128x256xf32>
    %cst_47 = arith.constant dense<0.000000e+00> : vector<1x256xf32>
    %76 = tpu.matmul %73, %75, %cst_47 {dimension_numbers = #tpu.dot_dimension_numbers<[1], [0], [0], [1], [0, 0, 1, 1], [], []>} : vector<1x128xf32>, vector<128x256xf32>, vector<1x256xf32> -> vector<1x256xf32>
    %77 = arith.addf %72, %76 : vector<1x256xf32>
    %78 = vector.extract_strided_slice %16 {offsets = [12, 0], sizes = [1, 128], strides = [1, 1]} : vector<16x128xf32> to vector<1x128xf32>
    %c12 = arith.constant 12 : index
    %c0_48 = arith.constant 0 : index
    %c0_49 = arith.constant 0 : index
    %79 = vector.load %arg5[%c12, %c0_48, %c0_49] : memref<16x128x256xf32, #tpu.memory_space<vmem>>, vector<1x128x256xf32>
    %80 = vector.shape_cast %79 : vector<1x128x256xf32> to vector<128x256xf32>
    %cst_50 = arith.constant dense<0.000000e+00> : vector<1x256xf32>
    %81 = tpu.matmul %78, %80, %cst_50 {dimension_numbers = #tpu.dot_dimension_numbers<[1], [0], [0], [1], [0, 0, 1, 1], [], []>} : vector<1x128xf32>, vector<128x256xf32>, vector<1x256xf32> -> vector<1x256xf32>
    %82 = arith.addf %77, %81 : vector<1x256xf32>
    %83 = vector.extract_strided_slice %16 {offsets = [13, 0], sizes = [1, 128], strides = [1, 1]} : vector<16x128xf32> to vector<1x128xf32>
    %c13 = arith.constant 13 : index
    %c0_51 = arith.constant 0 : index
    %c0_52 = arith.constant 0 : index
    %84 = vector.load %arg5[%c13, %c0_51, %c0_52] : memref<16x128x256xf32, #tpu.memory_space<vmem>>, vector<1x128x256xf32>
    %85 = vector.shape_cast %84 : vector<1x128x256xf32> to vector<128x256xf32>
    %cst_53 = arith.constant dense<0.000000e+00> : vector<1x256xf32>
    %86 = tpu.matmul %83, %85, %cst_53 {dimension_numbers = #tpu.dot_dimension_numbers<[1], [0], [0], [1], [0, 0, 1, 1], [], []>} : vector<1x128xf32>, vector<128x256xf32>, vector<1x256xf32> -> vector<1x256xf32>
    %87 = arith.addf %82, %86 : vector<1x256xf32>
    %88 = vector.extract_strided_slice %16 {offsets = [14, 0], sizes = [1, 128], strides = [1, 1]} : vector<16x128xf32> to vector<1x128xf32>
    %c14 = arith.constant 14 : index
    %c0_54 = arith.constant 0 : index
    %c0_55 = arith.constant 0 : index
    %89 = vector.load %arg5[%c14, %c0_54, %c0_55] : memref<16x128x256xf32, #tpu.memory_space<vmem>>, vector<1x128x256xf32>
    %90 = vector.shape_cast %89 : vector<1x128x256xf32> to vector<128x256xf32>
    %cst_56 = arith.constant dense<0.000000e+00> : vector<1x256xf32>
    %91 = tpu.matmul %88, %90, %cst_56 {dimension_numbers = #tpu.dot_dimension_numbers<[1], [0], [0], [1], [0, 0, 1, 1], [], []>} : vector<1x128xf32>, vector<128x256xf32>, vector<1x256xf32> -> vector<1x256xf32>
    %92 = arith.addf %87, %91 : vector<1x256xf32>
    %93 = vector.extract_strided_slice %16 {offsets = [15, 0], sizes = [1, 128], strides = [1, 1]} : vector<16x128xf32> to vector<1x128xf32>
    %c15 = arith.constant 15 : index
    %c0_57 = arith.constant 0 : index
    %c0_58 = arith.constant 0 : index
    %94 = vector.load %arg5[%c15, %c0_57, %c0_58] : memref<16x128x256xf32, #tpu.memory_space<vmem>>, vector<1x128x256xf32>
    %95 = vector.shape_cast %94 : vector<1x128x256xf32> to vector<128x256xf32>
    %cst_59 = arith.constant dense<0.000000e+00> : vector<1x256xf32>
    %96 = tpu.matmul %93, %95, %cst_59 {dimension_numbers = #tpu.dot_dimension_numbers<[1], [0], [0], [1], [0, 0, 1, 1], [], []>} : vector<1x128xf32>, vector<128x256xf32>, vector<1x256xf32> -> vector<1x256xf32>
    %97 = arith.addf %92, %96 : vector<1x256xf32>
    %c0_60 = arith.constant 0 : index
    %c0_61 = arith.constant 0 : index
    %98 = vector.load %arg8[%c0_60, %c0_61] : memref<1x256xf32, #tpu.memory_space<vmem>>, vector<1x256xf32>
    tpu.vector_store %arg8[%c0_60, %c0_61], %97 {strides = array<i32>} : memref<1x256xf32, #tpu.memory_space<vmem>>, vector<1x256xf32>,
    %c0_i32_62 = arith.constant 0 : i32
    %99 = arith.cmpi eq, %arg1, %c0_i32_62 : i32
    %100 = arith.extui %99 : i1 to i32
    %c0_i32_63 = arith.constant 0 : i32
    %101 = arith.cmpi ne, %100, %c0_i32_63 : i32
    scf.if %101 {
      %c0_64 = arith.constant 0 : index
      %c0_65 = arith.constant 0 : index
      %102 = vector.load %arg6[%c0_64, %c0_65] : memref<1x256xf32, #tpu.memory_space<vmem>>, vector<1x256xf32>
      %103 = arith.addf %97, %102 : vector<1x256xf32>
      %104 = vector.extract_strided_slice %103 {offsets = [0, 0], sizes = [1, 128], strides = [1, 1]} : vector<1x256xf32> to vector<1x128xf32>
      %105 = math.exp %104 : vector<1x128xf32>
      %cst_66 = arith.constant 9.99999997E-7 : f32
      %106 = vector.broadcast %cst_66 : f32 to vector<1x128xf32>
      %107 = arith.addf %105, %106 : vector<1x128xf32>
      %c0_67 = arith.constant 0 : index
      %c0_68 = arith.constant 0 : index
      %c0_69 = arith.constant 0 : index
      %108 = vector.load %arg7[%c0_67, %c0_68, %c0_69] : memref<1x1x256xf32, #tpu.memory_space<vmem>>, vector<1x1x128xf32>
      %109 = vector.shape_cast %108 : vector<1x1x128xf32> to vector<1x128xf32>
      %110 = vector.shape_cast %107 : vector<1x128xf32> to vector<1x1x128xf32>
      tpu.vector_store %arg7[%c0_67, %c0_68, %c0_69], %110 {strides = array<i32>} : memref<1x1x256xf32, #tpu.memory_space<vmem>>, vector<1x1x128xf32>,
      %111 = vector.extract_strided_slice %103 {offsets = [0, 128], sizes = [1, 128], strides = [1, 1]} : vector<1x256xf32> to vector<1x128xf32>
      %112 = arith.negf %111 : vector<1x128xf32>
      %113 = math.exp %112 : vector<1x128xf32>
      %cst_70 = arith.constant 1.000000e+00 : f32
      %114 = vector.broadcast %cst_70 : f32 to vector<1x128xf32>
      %115 = arith.addf %114, %113 : vector<1x128xf32>
      %116 = arith.divf %114, %115 : vector<1x128xf32>
      %cst_71 = arith.constant 0.999989986 : f32
      %117 = vector.broadcast %cst_71 : f32 to vector<1x128xf32>
      %118 = arith.mulf %116, %117 : vector<1x128xf32>
      %cst_72 = arith.constant 9.99999997E-7 : f32
      %119 = vector.broadcast %cst_72 : f32 to vector<1x128xf32>
      %120 = arith.addf %118, %119 : vector<1x128xf32>
      %c0_73 = arith.constant 0 : index
      %c0_74 = arith.constant 0 : index
      %c128 = arith.constant 128 : index
      %121 = vector.load %arg7[%c0_73, %c0_74, %c128] : memref<1x1x256xf32, #tpu.memory_space<vmem>>, vector<1x1x128xf32>
      %122 = vector.shape_cast %121 : vector<1x1x128xf32> to vector<1x128xf32>
      %123 = vector.shape_cast %120 : vector<1x128xf32> to vector<1x1x128xf32>
      tpu.vector_store %arg7[%c0_73, %c0_74, %c128], %123 {strides = array<i32>} : memref<1x1x256xf32, #tpu.memory_space<vmem>>, vector<1x1x128xf32>,
    } else {
    }
    return
  }
  func.func @transform_0(%arg0: i32, %arg1: i32) -> (i32, i32) {
    %c1_i32 = arith.constant 1 : i32
    %0 = arith.muli %arg0, %c1_i32 : i32
    %1 = arith.addi %0, %arg1 : i32
    %c0_i32 = arith.constant 0 : i32
    %c0_i32_0 = arith.constant 0 : i32
    return %1, %c0_i32 : i32, i32
  }
  func.func @transform_1(%arg0: i32, %arg1: i32) -> (i32, i32) {
    %c0_i32 = arith.constant 0 : i32
    %c0_i32_0 = arith.constant 0 : i32
    %c0_i32_1 = arith.constant 0 : i32
    return %c0_i32, %c0_i32_0 : i32, i32
  }
  func.func @transform_2(%arg0: i32, %arg1: i32) -> (i32, i32) {
    %c0_i32 = arith.constant 0 : i32
    %c0_i32_0 = arith.constant 0 : i32
    %c0_i32_1 = arith.constant 0 : i32
    return %c0_i32, %c0_i32_0 : i32, i32
  }
  func.func @transform_3(%arg0: i32, %arg1: i32) -> (i32, i32, i32) {
    %c0_i32 = arith.constant 0 : i32
    %c0_i32_0 = arith.constant 0 : i32
    %c0_i32_1 = arith.constant 0 : i32
    return %arg1, %c0_i32, %c0_i32_0 : i32, i32, i32
  }
  func.func @transform_4(%arg0: i32, %arg1: i32) -> (i32, i32) {
    %c0_i32 = arith.constant 0 : i32
    %c0_i32_0 = arith.constant 0 : i32
    %c0_i32_1 = arith.constant 0 : i32
    return %c0_i32, %c0_i32_0 : i32, i32
  }
  func.func @transform_5(%arg0: i32, %arg1: i32) -> (i32, i32, i32) {
    %c0_i32 = arith.constant 0 : i32
    %c0_i32_0 = arith.constant 0 : i32
    %c0_i32_1 = arith.constant 0 : i32
    return %arg0, %c0_i32, %c0_i32_0 : i32, i32, i32
  }
}

</mosaic_0001>

<llo_original>
// kernel: tpu_custom_call.1
$region0: #{tpu_custom_call.1}
  #allocation0 [shape = 'u32[]', space=smem, size = 0x4, offset = 0x4, fixed_abs, tag = 'smem constant byte address 0x4 - core index']
  #allocation1 [shape = 'u32[144,128]{1,0:T(1,128)}', space=vmem, size = 0x12000, scoped, tag = 'internal scratch']
  #allocation2 [shape = 'f32[1,256]{1,0:T(1,128)}', space=vmem, size = 0x400, scoped, tag = 'scratch operand']
  %s0 = inlined_call_operand.hbm [shape: f32[32,256], index: 0, kind: input, shape index: {}]
  %s1 = inlined_call_operand.hbm [shape: f32[256,128], index: 1, kind: input, shape index: {}]
  %s2 = inlined_call_operand.hbm [shape: f32[1,128], index: 2, kind: input, shape index: {}]
  %s3 = inlined_call_operand.hbm [shape: f32[16,128,256], index: 3, kind: input, shape index: {}]
  %s4 = inlined_call_operand.hbm [shape: f32[1,256], index: 4, kind: input, shape index: {}]
  %s5 = inlined_call_operand.hbm [shape: f32[2,1,256], index: 5, kind: output, shape index: {}]
  %s6 = sld [smem:[#allocation0]]
  $region81: #{tpu_custom_call.1} parent=0
    _
  %s8 = ssub.s32 1, %s6
  %s9 = scalar_select 0, %s8, %s6
  $region1: #{tpu_custom_call.1} parent=0
    #allocation3 [shape = 'u8[32768]{0}', space=vmem, size = 0x8000, scoped, tag = 'input window, operand 0']
    #allocation4 [shape = 's32[2]{0}', space=sflag, size = 0x8, scoped, tag = 'scoped memory for tpu_custom_call.1']
    #allocation5 [shape = 's32[2]{0}', space=sflag, size = 0x8, scoped, tag = 'scoped memory for tpu_custom_call.1']
    #allocation6 [shape = 'u8[131072]{0}', space=vmem, size = 0x20000, scoped, tag = 'input window, operand 1, single buffered']
    #allocation7 [shape = 's32[1]{0}', space=sflag, size = 0x4, scoped, tag = 'scoped memory for tpu_custom_call.1']
    #allocation8 [shape = 'u8[512]{0}', space=vmem, size = 0x400, scoped, tag = 'input window, operand 2, single buffered']
    #allocation9 [shape = 'u8[2097152]{0}', space=vmem, size = 0x200000, scoped, tag = 'input window, operand 3, single buffered']
    #allocation10 [shape = 's32[1]{0}', space=sflag, size = 0x4, scoped, tag = 'scoped memory for tpu_custom_call.1']
    #allocation11 [shape = 'u8[1024]{0}', space=vmem, size = 0x400, scoped, tag = 'input window, operand 4, single buffered']
    #allocation12 [shape = 'u8[2048]{0}', space=vmem, size = 0x800, scoped, tag = 'output window, operand 0']
    %10 = vsyncpa [#allocation4], 0
    %s11 = scalar_lea.sflag [#allocation4], 1
    %12 = vsyncpa %s11, 0
    %13 = vsyncpa [#allocation7], 0
    %14 = vsyncpa [#allocation10], 0
    %15 = vsyncpa [#allocation5], 0
    %s16 = scalar_lea.sflag [#allocation5], 1
    %17 = vsyncpa %s16, 0
    loop: start=0, step=1, limit=4
    $region2: #{tpu_custom_call.1} parent=1 // loop_pre_header
      _
    $region3: #{tpu_custom_call.1} parent=1 // loop_header
      %s19 = sphi 0, %s23
      %p20 = scmp.ge.s32.totalorder %s19, 4
      %s26 = sphi 0, %s38
      %s27 = sphi 0, %s34
      %s28 = sphi 0, %s26
      %s29 = sphi 0, %s27
      %s30 = sphi 0, %s28
      %s31 = sphi 0, %s29
      %s43 = sphi 0, %s45
      %s46 = sphi 0, %s43
      %s47 = sphi 0, %s46
      %s63 = sphi 0, %s47
      %s67 = sphi 0, %s67
      %s69 = sphi 0, %s67
      %s70 = sphi 0, %s69
      %s84 = sphi 0, %s70
      %s88 = sphi 0, %s88
      %s90 = sphi 0, %s88
      %s91 = sphi 0, %s90
      %s105 = sphi 0, %s91
      %s111 = sphi 0, %s113
      %s114 = sphi 0, %s111
      %s115 = sphi 0, %s114
      %s131 = sphi 0, %s115
      %s135 = sphi 0, %s135
      %s137 = sphi 0, %s135
      %s138 = sphi 0, %s137
      %s152 = sphi 0, %s138
      %s158 = sphi 0, %s160
      %s161 = sphi 0, %s158
      %s162 = sphi 0, %s161
      %s178 = sphi 0, %s162
    $region4: #{tpu_custom_call.1} parent=1 // loop_header_branch
      %22 = sbr.rel (%p20) target = $region8
    $region5: #{tpu_custom_call.1} parent=1 // loop_body
      %s24 = ssub.s32 %s19, 1
      %s25 = ssub.s32 %s19, 2
      %s32 = sadd.s32 1, %s27
      %p33 = scmp.ge.s32.totalorder %s32, 1
      %s34 = scalar_select %p33, 0, %s32
      %s35 = sadd.s32 1, %s26
      %s36 = scalar_select %p33, %s35, %s26
      %p37 = scmp.ge.s32.totalorder %s36, 2
      %s38 = scalar_select %p37, 0, %s36
      %s39 = sadd.s32 %s26, %s27
      %s40 = sadd.s32 %s38, %s34
      %s41 = ssub.s32 %s39, %s40
      %p42 = scmp.eq.s32.totalorder %s41, 0
      %s44 = sadd.s32 %s43, 1
      %s45 = scalar_select %p42, %s43, %s44
      %p48 = pneg %p42
      %p49 = scmp.eq.s32.totalorder %s19, 1
      %p50 = por %p48, %p49
      %p51 = scmp.ne.s32.totalorder %s43, %s46
      %p52 = scmp.eq.s32.totalorder %s19, 0
      %p53 = por %p51, %p52
      %p54 = scmp.ne.s32.totalorder %s43, %s46
      %p55 = scmp.eq.s32.totalorder %s24, 1
      %p56 = por %p54, %p55
      %p57 = scmp.ne.s32.totalorder %s46, %s47
      %p58 = scmp.eq.s32.totalorder %s24, 0
      %p59 = por %p57, %p58
      %p60 = scmp.ne.s32.totalorder %s46, %s47
      %p61 = scmp.eq.s32.totalorder %s25, 1
      %p62 = por %p60, %p61
      %p64 = scmp.ne.s32.totalorder %s47, %s63
      %p65 = scmp.eq.s32.totalorder %s25, 0
      %p66 = por %p64, %p65
      %s68 = sadd.s32 %s67, 1
      %p71 = scmp.eq.s32.totalorder %s19, 1
      %p72 = scmp.ne.s32.totalorder %s67, %s69
      %p73 = scmp.eq.s32.totalorder %s19, 0
      %p74 = por %p72, %p73
      %p75 = scmp.ne.s32.totalorder %s67, %s69
      %p76 = scmp.eq.s32.totalorder %s24, 1
      %p77 = por %p75, %p76
      %p78 = scmp.ne.s32.totalorder %s69, %s70
      %p79 = scmp.eq.s32.totalorder %s24, 0
      %p80 = por %p78, %p79
      %p81 = scmp.ne.s32.totalorder %s69, %s70
      %p82 = scmp.eq.s32.totalorder %s25, 1
      %p83 = por %p81, %p82
      %p85 = scmp.ne.s32.totalorder %s70, %s84
      %p86 = scmp.eq.s32.totalorder %s25, 0
      %p87 = por %p85, %p86
      %s89 = sadd.s32 %s88, 1
      %p92 = scmp.eq.s32.totalorder %s19, 1
      %p93 = scmp.ne.s32.totalorder %s88, %s90
      %p94 = scmp.eq.s32.totalorder %s19, 0
      %p95 = por %p93, %p94
      %p96 = scmp.ne.s32.totalorder %s88, %s90
      %p97 = scmp.eq.s32.totalorder %s24, 1
      %p98 = por %p96, %p97
      %p99 = scmp.ne.s32.totalorder %s90, %s91
      %p100 = scmp.eq.s32.totalorder %s24, 0
      %p101 = por %p99, %p100
      %p102 = scmp.ne.s32.totalorder %s90, %s91
      %p103 = scmp.eq.s32.totalorder %s25, 1
      %p104 = por %p102, %p103
      %p106 = scmp.ne.s32.totalorder %s91, %s105
      %p107 = scmp.eq.s32.totalorder %s25, 0
      %p108 = por %p106, %p107
      %s109 = ssub.s32 %s27, %s34
      %p110 = scmp.eq.s32.totalorder %s109, 0
      %s112 = sadd.s32 %s111, 1
      %s113 = scalar_select %p110, %s111, %s112
      %p116 = pneg %p110
      %p117 = scmp.eq.s32.totalorder %s19, 1
      %p118 = por %p116, %p117
      %p119 = scmp.ne.s32.totalorder %s111, %s114
      %p120 = scmp.eq.s32.totalorder %s19, 0
      %p121 = por %p119, %p120
      %p122 = scmp.ne.s32.totalorder %s111, %s114
      %p123 = scmp.eq.s32.totalorder %s24, 1
      %p124 = por %p122, %p123
      %p125 = scmp.ne.s32.totalorder %s114, %s115
      %p126 = scmp.eq.s32.totalorder %s24, 0
      %p127 = por %p125, %p126
      %p128 = scmp.ne.s32.totalorder %s114, %s115
      %p129 = scmp.eq.s32.totalorder %s25, 1
      %p130 = por %p128, %p129
      %p132 = scmp.ne.s32.totalorder %s115, %s131
      %p133 = scmp.eq.s32.totalorder %s25, 0
      %p134 = por %p132, %p133
      %s136 = sadd.s32 %s135, 1
      %p139 = scmp.eq.s32.totalorder %s19, 1
      %p140 = scmp.ne.s32.totalorder %s135, %s137
      %p141 = scmp.eq.s32.totalorder %s19, 0
      %p142 = por %p140, %p141
      %p143 = scmp.ne.s32.totalorder %s135, %s137
      %p144 = scmp.eq.s32.totalorder %s24, 1
      %p145 = por %p143, %p144
      %p146 = scmp.ne.s32.totalorder %s137, %s138
      %p147 = scmp.eq.s32.totalorder %s24, 0
      %p148 = por %p146, %p147
      %p149 = scmp.ne.s32.totalorder %s137, %s138
      %p150 = scmp.eq.s32.totalorder %s25, 1
      %p151 = por %p149, %p150
      %p153 = scmp.ne.s32.totalorder %s138, %s152
      %p154 = scmp.eq.s32.totalorder %s25, 0
      %p155 = por %p153, %p154
      %s156 = ssub.s32 %s26, %s38
      %p157 = scmp.eq.s32.totalorder %s156, 0
      %s159 = sadd.s32 %s158, 1
      %s160 = scalar_select %p157, %s158, %s159
      %p163 = pneg %p157
      %p164 = scmp.eq.s32.totalorder %s19, 1
      %p165 = por %p163, %p164
      %p166 = scmp.ne.s32.totalorder %s158, %s161
      %p167 = scmp.eq.s32.totalorder %s19, 0
      %p168 = por %p166, %p167
      %p169 = scmp.ne.s32.totalorder %s158, %s161
      %p170 = scmp.eq.s32.totalorder %s24, 1
      %p171 = por %p169, %p170
      %p172 = scmp.ne.s32.totalorder %s161, %s162
      %p173 = scmp.eq.s32.totalorder %s24, 0
      %p174 = por %p172, %p173
      %p175 = scmp.ne.s32.totalorder %s161, %s162
      %p176 = scmp.eq.s32.totalorder %s25, 1
      %p177 = por %p175, %p176
      %p179 = scmp.ne.s32.totalorder %s162, %s178
      %p180 = scmp.eq.s32.totalorder %s25, 0
      %p181 = por %p179, %p180
      %p182 = scmp.le.s32.totalorder 1, %s19
      %p183 = scmp.lt.s32.totalorder %s19, 3
      %p184 = pnand %p182, %p183
      %p185 = pneg %p184
      // Predicated region
      $region9: #{tpu_custom_call.1} parent=5 // pred_check
        _
      $region10: #{tpu_custom_call.1} parent=5 // pred_check_branch
        %187 = sbr.rel (%p184) target = $region12
      $region11: #{tpu_custom_call.1} parent=5 // pred_region
        %s188 = ssub.s32 %s19, 1
        // Predicated region
        $region13: #{tpu_custom_call.1} parent=11 // pred_check
          %p189 = pneg %p80
        $region14: #{tpu_custom_call.1} parent=11 // pred_check_branch
          %191 = sbr.rel (%p189) target = $region16
        $region15: #{tpu_custom_call.1} parent=11 // pred_region
          %s193 = ssub.s32 4096, 4096
          %194 = vsyncadd [#allocation7], %s193
          %s195 = sshll.u32 [#allocation6], 4
          %s196 = int_to_ptr.vmem [resolvable:$true] %s195
          %201 = dma.hbm_to_vmem [thread:$0]  %s1, 4096, %s196, [#allocation7], 128, 128, 8
        $region16: #{tpu_custom_call.1} parent=11 // pred_fallthru
          _
        // Predicated region
        $region17: #{tpu_custom_call.1} parent=11 // pred_check
          %p202 = pneg %p101
        $region18: #{tpu_custom_call.1} parent=11 // pred_check_branch
          %204 = sbr.rel (%p202) target = $region20
        $region19: #{tpu_custom_call.1} parent=11 // pred_region
          %s206 = ssub.s32 16, 16
          %207 = vsyncadd [#allocation7], %s206
          %s209 = sshll.u32 [#allocation8], 4
          %s210 = int_to_ptr.vmem [resolvable:$true] %s209
          %212 = dma.hbm_to_vmem [thread:$0]  %s2, 16, %s210, [#allocation7]
        $region20: #{tpu_custom_call.1} parent=11 // pred_fallthru
          _
        // Predicated region
        $region21: #{tpu_custom_call.1} parent=11 // pred_check
          %p213 = pneg %p127
        $region22: #{tpu_custom_call.1} parent=11 // pred_check_branch
          %215 = sbr.rel (%p213) target = $region24
        $region23: #{tpu_custom_call.1} parent=11 // pred_region
          %s216 = smul.u32 16, %s29
          %s218 = ssub.s32 65536, 65536
          %219 = vsyncadd [#allocation10], %s218
          %s220 = smul.addr %s216, 32
          %s221 = smul.addr %s220, 128
          %s222 = scalar_lea.hbm %s3, %s221
          %s223 = sshll.u32 [#allocation9], 4
          %s224 = int_to_ptr.vmem [resolvable:$true] %s223
          %229 = dma.hbm_to_vmem [thread:$0]  %s222, 65536, %s224, [#allocation10], 256, 256, 16
        $region24: #{tpu_custom_call.1} parent=11 // pred_fallthru
          _
        // Predicated region
        $region25: #{tpu_custom_call.1} parent=11 // pred_check
          %p230 = pneg %p148
        $region26: #{tpu_custom_call.1} parent=11 // pred_check_branch
          %232 = sbr.rel (%p230) target = $region28
        $region27: #{tpu_custom_call.1} parent=11 // pred_region
          %s234 = ssub.s32 32, 32
          %235 = vsyncadd [#allocation10], %s234
          %s237 = sshll.u32 [#allocation11], 4
          %s238 = int_to_ptr.vmem [resolvable:$true] %s237
          %240 = dma.hbm_to_vmem [thread:$0]  %s4, 32, %s238, [#allocation10]
        $region28: #{tpu_custom_call.1} parent=11 // pred_fallthru
          _
      $region12: #{tpu_custom_call.1} parent=5 // pred_fallthru
        _
      %p241 = scmp.lt.s32.totalorder %s19, 2
      // Predicated region
      $region29: #{tpu_custom_call.1} parent=5 // pred_check
        %p242 = pneg %p241
      $region30: #{tpu_custom_call.1} parent=5 // pred_check_branch
        %244 = sbr.rel (%p242) target = $region32
      $region31: #{tpu_custom_call.1} parent=5 // pred_region
        // Predicated region
        $region33: #{tpu_custom_call.1} parent=31 // pred_check
          %p245 = pneg %p53
        $region34: #{tpu_custom_call.1} parent=31 // pred_check_branch
          %247 = sbr.rel (%p245) target = $region36
        $region35: #{tpu_custom_call.1} parent=31 // pred_region
          %s248 = sand.u32 %s43, 1
          %s249 = scalar_lea.sflag [#allocation4], %s248
          %s250 = sand.u32 %s43, 1
          %s251 = smul.addr %s250, 32
          %s252 = scalar_lea.vmem [#allocation3], %s251
          %s253 = sadd.s32 %s26, %s27
          %s254 = smul.u32 2, %s253
          %s256 = ssub.s32 512, 512
          %257 = vsyncadd %s249, %s256
          %s258 = smul.addr %s254, 2
          %s259 = smul.addr %s258, 128
          %s260 = scalar_lea.hbm %s0, %s259
          %s261 = sshll.u32 %s252, 4
          %s262 = int_to_ptr.vmem [resolvable:$true] %s261
          %267 = dma.hbm_to_vmem [thread:$0]  %s260, 512, %s262, %s249, 256, 256, 16
        $region36: #{tpu_custom_call.1} parent=31 // pred_fallthru
          _
      $region32: #{tpu_custom_call.1} parent=5 // pred_fallthru
        _
      %p268 = scmp.le.s32.totalorder 1, %s19
      %p269 = scmp.lt.s32.totalorder %s19, 3
      %p270 = pnand %p268, %p269
      %p271 = pneg %p270
      // Predicated region
      $region37: #{tpu_custom_call.1} parent=5 // pred_check
        _
      $region38: #{tpu_custom_call.1} parent=5 // pred_check_branch
        %273 = sbr.rel (%p270) target = $region40
      $region39: #{tpu_custom_call.1} parent=5 // pred_region
        %s274 = ssub.s32 %s19, 1
        %s275 = sand.u32 %s46, 1
        %s276 = scalar_lea.sflag [#allocation4], %s275
        %s277 = sand.u32 %s46, 1
        %s278 = smul.addr %s277, 32
        %s279 = scalar_lea.vmem [#allocation3], %s278
        // Predicated region
        $region41: #{tpu_custom_call.1} parent=39 // pred_check
          %p280 = pneg %p59
        $region42: #{tpu_custom_call.1} parent=39 // pred_check_branch
          %282 = sbr.rel (%p280) target = $region44
        $region43: #{tpu_custom_call.1} parent=39 // pred_region
          %283 = dma.done %s276, 512
        $region44: #{tpu_custom_call.1} parent=39 // pred_fallthru
          _
        // Predicated region
        $region45: #{tpu_custom_call.1} parent=39 // pred_check
          %p284 = pneg %p80
        $region46: #{tpu_custom_call.1} parent=39 // pred_check_branch
          %286 = sbr.rel (%p284) target = $region48
        $region47: #{tpu_custom_call.1} parent=39 // pred_region
          %287 = dma.done [#allocation7], 4096
        $region48: #{tpu_custom_call.1} parent=39 // pred_fallthru
          _
        // Predicated region
        $region49: #{tpu_custom_call.1} parent=39 // pred_check
          %p288 = pneg %p101
        $region50: #{tpu_custom_call.1} parent=39 // pred_check_branch
          %290 = sbr.rel (%p288) target = $region52
        $region51: #{tpu_custom_call.1} parent=39 // pred_region
          %291 = dma.done [#allocation7], 16
        $region52: #{tpu_custom_call.1} parent=39 // pred_fallthru
          _
        // Predicated region
        $region53: #{tpu_custom_call.1} parent=39 // pred_check
          %p292 = pneg %p127
        $region54: #{tpu_custom_call.1} parent=39 // pred_check_branch
          %294 = sbr.rel (%p292) target = $region56
        $region55: #{tpu_custom_call.1} parent=39 // pred_region
          %295 = dma.done [#allocation10], 65536
        $region56: #{tpu_custom_call.1} parent=39 // pred_fallthru
          _
        // Predicated region
        $region57: #{tpu_custom_call.1} parent=39 // pred_check
          %p296 = pneg %p148
        $region58: #{tpu_custom_call.1} parent=39 // pred_check_branch
          %298 = sbr.rel (%p296) target = $region60
        $region59: #{tpu_custom_call.1} parent=39 // pred_region
          %299 = dma.done [#allocation10], 32
        $region60: #{tpu_custom_call.1} parent=39 // pred_fallthru
          _
        %s300 = sand.u32 %s46, 1
        %s301 = scalar_lea.sflag [#allocation4], %s300
        %s302 = sand.u32 %s46, 1
        %s303 = smul.addr %s302, 32
        %s304 = scalar_lea.vmem [#allocation3], %s303
        %p305 = pneg %p59
        %p306 = pneg %p56
        %p307 = pneg %p80
        %p308 = pneg %p77
        %p309 = pneg %p101
        %p310 = pneg %p98
        %p311 = pneg %p127
        %p312 = pneg %p124
        %p313 = pneg %p148
        %p314 = pneg %p145
        %p315 = pneg %p174
        %p316 = pneg %p171
        %s317 = sand.u32 %s161, 1
        %s318 = scalar_lea.sflag [#allocation5], %s317
        %s319 = sand.u32 %s161, 1
        %s320 = smul.addr %s319, 2
        %s321 = scalar_lea.vmem [#allocation12], %s320
        %s322 = sadd.s32 %s28, %s29
        %s323 = smul.u32 2, %s322
        %s324 = smul.u32 16, %s29
        %p325 = scmp.eq.s32.totalorder %s29, 0
        // Predicated region
        $region61: #{tpu_custom_call.1} parent=39 // pred_check
          %p326 = pneg %p325
        $region62: #{tpu_custom_call.1} parent=39 // pred_check_branch
          %328 = sbr.rel (%p326) target = $region64
        $region63: #{tpu_custom_call.1} parent=39 // pred_region
          %v329 = vlaneseq
          %vm330 = vcmp.ge.s32.totalorder %v329, 0
          %vm331 = vcmp.lt.s32.totalorder %v329, 256
          %vm332 = vmand %vm330, %vm331
          %333 = vst.msk [vmem:[#allocation2] sm:$0x3] %vm332, 0.0
        $region64: #{tpu_custom_call.1} parent=39 // pred_fallthru
          _
        %v334 = vld [vmem:[%s279] sm:$0xff]
        %v335 = vld [vmem:[%s279 + $0x8] sm:$0xff]
        %v336 = vld [vmem:[%s279 + $0x10] sm:$0xff]
        %v337 = vld [vmem:[%s279 + $0x18] sm:$0xff]
        %v338 = vld [vmem:[#allocation6] sm:$0xff]
        %v339 = vld [vmem:[#allocation6 + $0x8] sm:$0xff]
        %v340 = vld [vmem:[#allocation6 + $0x10] sm:$0xff]
        %v341 = vld [vmem:[#allocation6 + $0x18] sm:$0xff]
        %v342 = vld [vmem:[#allocation6 + $0x20] sm:$0xff]
        %v343 = vld [vmem:[#allocation6 + $0x28] sm:$0xff]
        %v344 = vld [vmem:[#allocation6 + $0x30] sm:$0xff]
        %v345 = vld [vmem:[#allocation6 + $0x38] sm:$0xff]
        %v346 = vld [vmem:[#allocation6 + $0x40] sm:$0xff]
        %v347 = vld [vmem:[#allocation6 + $0x48] sm:$0xff]
        %v348 = vld [vmem:[#allocation6 + $0x50] sm:$0xff]
        %v349 = vld [vmem:[#allocation6 + $0x58] sm:$0xff]
        %v350 = vld [vmem:[#allocation6 + $0x60] sm:$0xff]
        %v351 = vld [vmem:[#allocation6 + $0x68] sm:$0xff]
        %v352 = vld [vmem:[#allocation6 + $0x70] sm:$0xff]
        %v353 = vld [vmem:[#allocation6 + $0x78] sm:$0xff]
        %v354 = vld [vmem:[#allocation6 + $0x80] sm:$0xff]
        %v355 = vld [vmem:[#allocation6 + $0x88] sm:$0xff]
        %v356 = vld [vmem:[#allocation6 + $0x90] sm:$0xff]
        %v357 = vld [vmem:[#allocation6 + $0x98] sm:$0xff]
        %v358 = vld [vmem:[#allocation6 + $0xa0] sm:$0xff]
        %v359 = vld [vmem:[#allocation6 + $0xa8] sm:$0xff]
        %v360 = vld [vmem:[#allocation6 + $0xb0] sm:$0xff]
        %v361 = vld [vmem:[#allocation6 + $0xb8] sm:$0xff]
        %v362 = vld [vmem:[#allocation6 + $0xc0] sm:$0xff]
        %v363 = vld [vmem:[#allocation6 + $0xc8] sm:$0xff]
        %v364 = vld [vmem:[#allocation6 + $0xd0] sm:$0xff]
        %v365 = vld [vmem:[#allocation6 + $0xd8] sm:$0xff]
        %v366 = vld [vmem:[#allocation6 + $0xe0] sm:$0xff]
        %v367 = vld [vmem:[#allocation6 + $0xe8] sm:$0xff]
        %v368 = vld [vmem:[#allocation6 + $0xf0] sm:$0xff]
        %v369 = vld [vmem:[#allocation6 + $0xf8] sm:$0xff]
        %v370 = vld [vmem:[#allocation8] sm:$0x1]
        %v372 = vlaneseq
        %v373 = vshrl.u32 %v372, 7
        %v374 = vsub.s32 0, %v373
        %v375 = vrot.slane %v370, %v374
        %377 = vmatprep.subr.mxu0 0.0
        %378 = vmatpush1.msra.mxu0 %v338
        %379 = vmatprep.subr.mxu0 0.0
        %380 = vmatpush1.msra.mxu0 %v339
        %381 = vmatprep.subr.mxu0 0.0
        %382 = vmatpush1.msra.mxu0 %v340
        %383 = vmatprep.subr.mxu0 0.0
        %384 = vmatpush1.msra.mxu0 %v341
        %385 = vmatprep.subr.mxu0 0.0
        %386 = vmatpush1.msra.mxu0 %v342
        %387 = vmatprep.subr.mxu0 0.0
        %388 = vmatpush1.msra.mxu0 %v343
        %389 = vmatprep.subr.mxu0 0.0
        %390 = vmatpush1.msra.mxu0 %v344
        %391 = vmatprep.subr.mxu0 0.0
        %392 = vmatpush1.msra.mxu0 %v345
        %393 = vmatprep.subr.mxu0 0.0
        %394 = vmatpush1.msra.mxu0 %v346
        %395 = vmatprep.subr.mxu0 0.0
        %396 = vmatpush1.msra.mxu0 %v347
        %397 = vmatprep.subr.mxu0 0.0
        %398 = vmatpush1.msra.mxu0 %v348
        %399 = vmatprep.subr.mxu0 0.0
        %400 = vmatpush1.msra.mxu0 %v349
        %401 = vmatprep.subr.mxu0 0.0
        %402 = vmatpush1.msra.mxu0 %v350
        %403 = vmatprep.subr.mxu0 0.0
        %404 = vmatpush1.msra.mxu0 %v351
        %405 = vmatprep.subr.mxu0 0.0
        %406 = vmatpush1.msra.mxu0 %v352
        %407 = vmatprep.subr.mxu0 0.0
        %408 = vmatpush1.msra.mxu0 %v353
        %409 = vmatprep.subr.mxu0 0.0
        %410 = vmatpush1.msra.mxu0 %v354
        %411 = vmatprep.subr.mxu0 0.0
        %412 = vmatpush1.msra.mxu0 %v355
        %413 = vmatprep.subr.mxu0 0.0
        %414 = vmatpush1.msra.mxu0 %v356
        %415 = vmatprep.subr.mxu0 0.0
        %416 = vmatpush1.msra.mxu0 %v357
        %417 = vmatprep.subr.mxu0 0.0
        %418 = vmatpush1.msra.mxu0 %v358
        %419 = vmatprep.subr.mxu0 0.0
        %420 = vmatpush1.msra.mxu0 %v359
        %421 = vmatprep.subr.mxu0 0.0
        %422 = vmatpush1.msra.mxu0 %v360
        %423 = vmatprep.subr.mxu0 0.0
        %424 = vmatpush1.msra.mxu0 %v361
        %425 = vmatprep.subr.mxu0 0.0
        %426 = vmatpush1.msra.mxu0 %v362
        %427 = vmatprep.subr.mxu0 0.0
        %428 = vmatpush1.msra.mxu0 %v363
        %429 = vmatprep.subr.mxu0 0.0
        %430 = vmatpush1.msra.mxu0 %v364
        %431 = vmatprep.subr.mxu0 0.0
        %432 = vmatpush1.msra.mxu0 %v365
        %433 = vmatprep.subr.mxu0 0.0
        %434 = vmatpush1.msra.mxu0 %v366
        %435 = vmatprep.subr.mxu0 0.0
        %436 = vmatpush1.msra.mxu0 %v367
        %437 = vmatprep.subr.mxu0 0.0
        %438 = vmatpush1.msra.mxu0 %v368
        %439 = vmatprep.subr.mxu0 0.0
        %440 = vmatpush1.msra.mxu0 %v369
        %441 = vmatprep.mubr.f32.mxu0 %v335
        %442 = vmatmul.mubr.f32.gmra.mrb[0].mxu0 %v334
        %v443 = vpop.f32.mrb[0].mxu0
        %v444 = vadd.f32 %v375, %v443
        %v445 = vpop.f32.mrb[0].mxu0
        %446 = vmatprep.mubr.f32.mxu0 %v337
        %447 = vmatmul.mubr.f32.gmra.mrb[0].mxu0 %v336
        %v448 = vpop.f32.mrb[0].mxu0
        %v449 = vadd.f32 %v375, %v448
        %v450 = vpop.f32.mrb[0].mxu0
        %451 = vdwg.mxu0
        %vm452 = vcmp.gt.f32.partialorder %v444, 0.0
        %vm453 = vcmp.gt.f32.partialorder %v449, 0.0
        %v454 = vmin.f32 %v444, 0.0
        %v455 = vmin.f32 %v449, 0.0
        %v456 = vmul.f32 %v454, 1.442695
        %v457 = vpow.pop %v456
        %v458 = vmul.f32 %v455, 1.442695
        %v459 = vpow.pop %v458
        %v460 = vsub.f32 %v457, 1.0
        %v461 = vsub.f32 %v459, 1.0
        %v462 = vsel %vm452, %v444, %v460
        %v463 = vsel %vm453, %v449, %v461
        %v464 = vld [vmem:[#allocation2] sm:$0x3]
        %v465 = vld [vmem:[#allocation9] sm:$0xff]
        %v466 = vld [vmem:[#allocation9 + $0x8] sm:$0xff]
        %v467 = vld [vmem:[#allocation9 + $0x10] sm:$0xff]
        %v468 = vld [vmem:[#allocation9 + $0x18] sm:$0xff]
        %v469 = vld [vmem:[#allocation9 + $0x20] sm:$0xff]
        %v470 = vld [vmem:[#allocation9 + $0x28] sm:$0xff]
        %v471 = vld [vmem:[#allocation9 + $0x30] sm:$0xff]
        %v472 = vld [vmem:[#allocation9 + $0x38] sm:$0xff]
        %v473 = vld [vmem:[#allocation9 + $0x40] sm:$0xff]
        %v474 = vld [vmem:[#allocation9 + $0x48] sm:$0xff]
        %v475 = vld [vmem:[#allocation9 + $0x50] sm:$0xff]
        %v476 = vld [vmem:[#allocation9 + $0x58] sm:$0xff]
        %v477 = vld [vmem:[#allocation9 + $0x60] sm:$0xff]
        %v478 = vld [vmem:[#allocation9 + $0x68] sm:$0xff]
        %v479 = vld [vmem:[#allocation9 + $0x70] sm:$0xff]
        %v480 = vld [vmem:[#allocation9 + $0x78] sm:$0xff]
        %v481 = vld [vmem:[#allocation9 + $0x80] sm:$0xff]
        %v482 = vld [vmem:[#allocation9 + $0x88] sm:$0xff]
        %v483 = vld [vmem:[#allocation9 + $0x90] sm:$0xff]
        %v484 = vld [vmem:[#allocation9 + $0x98] sm:$0xff]
        %v485 = vld [vmem:[#allocation9 + $0xa0] sm:$0xff]
        %v486 = vld [vmem:[#allocation9 + $0xa8] sm:$0xff]
        %v487 = vld [vmem:[#allocation9 + $0xb0] sm:$0xff]
        %v488 = vld [vmem:[#allocation9 + $0xb8] sm:$0xff]
        %v489 = vld [vmem:[#allocation9 + $0xc0] sm:$0xff]
        %v490 = vld [vmem:[#allocation9 + $0xc8] sm:$0xff]
        %v491 = vld [vmem:[#allocation9 + $0xd0] sm:$0xff]
        %v492 = vld [vmem:[#allocation9 + $0xd8] sm:$0xff]
        %v493 = vld [vmem:[#allocation9 + $0xe0] sm:$0xff]
        %v494 = vld [vmem:[#allocation9 + $0xe8] sm:$0xff]
        %v495 = vld [vmem:[#allocation9 + $0xf0] sm:$0xff]
        %v496 = vld [vmem:[#allocation9 + $0xf8] sm:$0xff]
        %497 = vmatprep.subr.mxu0 %v466
        %498 = vmatpush1.msra.mxu0 %v465
        %499 = vmatprep.subr.mxu0 %v468
        %500 = vmatpush1.msra.mxu0 %v467
        %501 = vmatprep.subr.mxu0 %v470
        %502 = vmatpush1.msra.mxu0 %v469
        %503 = vmatprep.subr.mxu0 %v472
        %504 = vmatpush1.msra.mxu0 %v471
        %505 = vmatprep.subr.mxu0 %v474
        %506 = vmatpush1.msra.mxu0 %v473
        %507 = vmatprep.subr.mxu0 %v476
        %508 = vmatpush1.msra.mxu0 %v475
        %509 = vmatprep.subr.mxu0 %v478
        %510 = vmatpush1.msra.mxu0 %v477
        %511 = vmatprep.subr.mxu0 %v480
        %512 = vmatpush1.msra.mxu0 %v479
        %513 = vmatprep.subr.mxu0 %v482
        %514 = vmatpush1.msra.mxu0 %v481
        %515 = vmatprep.subr.mxu0 %v484
        %516 = vmatpush1.msra.mxu0 %v483
        %517 = vmatprep.subr.mxu0 %v486
        %518 = vmatpush1.msra.mxu0 %v485
        %519 = vmatprep.subr.mxu0 %v488
        %520 = vmatpush1.msra.mxu0 %v487
        %521 = vmatprep.subr.mxu0 %v490
        %522 = vmatpush1.msra.mxu0 %v489
        %523 = vmatprep.subr.mxu0 %v492
        %524 = vmatpush1.msra.mxu0 %v491
        %525 = vmatprep.subr.mxu0 %v494
        %526 = vmatpush1.msra.mxu0 %v493
        %527 = vmatprep.subr.mxu0 %v496
        %528 = vmatpush1.msra.mxu0 %v495
        %529 = vmatprep.subr.mxu0 0.0
        %530 = vmatpush1.msra.mxu0 0.0
        %531 = vmatprep.subr.mxu0 0.0
        %532 = vmatpush1.msra.mxu0 0.0
        %533 = vmatprep.subr.mxu0 0.0
        %534 = vmatpush1.msra.mxu0 0.0
        %535 = vmatprep.subr.mxu0 0.0
        %536 = vmatpush1.msra.mxu0 0.0
        %537 = vmatprep.subr.mxu0 0.0
        %538 = vmatpush1.msra.mxu0 0.0
        %539 = vmatprep.subr.mxu0 0.0
        %540 = vmatpush1.msra.mxu0 0.0
        %541 = vmatprep.subr.mxu0 0.0
        %542 = vmatpush1.msra.mxu0 0.0
        %543 = vmatprep.subr.mxu0 0.0
        %544 = vmatpush1.msra.mxu0 0.0
        %545 = vmatprep.subr.mxu0 0.0
        %546 = vmatpush1.msra.mxu0 0.0
        %547 = vmatprep.subr.mxu0 0.0
        %548 = vmatpush1.msra.mxu0 0.0
        %549 = vmatprep.subr.mxu0 0.0
        %550 = vmatpush1.msra.mxu0 0.0
        %551 = vmatprep.subr.mxu0 0.0
        %552 = vmatpush1.msra.mxu0 0.0
        %553 = vmatprep.subr.mxu0 0.0
        %554 = vmatpush1.msra.mxu0 0.0
        %555 = vmatprep.subr.mxu0 0.0
        %556 = vmatpush1.msra.mxu0 0.0
        %557 = vmatprep.subr.mxu0 0.0
        %558 = vmatpush1.msra.mxu0 0.0
        %559 = vmatprep.subr.mxu0 0.0
        %560 = vmatpush1.msra.mxu0 0.0
        %561 = vmatprep.mubr.f32.mxu0 0.0
        %562 = vmatmul.mubr.f32.gmra.mrb[0].mxu0 %v462
        %v563 = vpop.f32.mrb[0].mxu0
        %v564 = vadd.f32 0.0, %v563
        %v565 = vpop.f32.mrb[0].mxu0
        %v566 = vadd.f32 0.0, %v565
        %567 = vdwg.mxu0
        %v570 = vcombine.low %v564, %v566
        %v572 = vunpack.c.l.s4 1966171168
        %v573 = vunpack.c.0.s8 %v572
        %v574 = vlaneseq
        %v575 = vshrl.u32 %v574, 7
        %v576 = vsub.s32 %v573, %v575
        %v577 = vrot.slane %v570, %v576
        %v579 = vunpack.c.l.s4 1966171168
        %v580 = vunpack.c.0.s8 %v579
        %v581 = vlaneseq
        %v582 = vshrl.u32 %v581, 7
        %v583 = vsub.s32 %v580, %v582
        %v584 = vrot.slane %v577, %v583
        %v586 = vadd.f32 %v464, %v584
        %s587 = scalar_lea.vmem [#allocation9], 256
        %v588 = vld [vmem:[%s587] sm:$0xff]
        %v589 = vld [vmem:[%s587 + $0x8] sm:$0xff]
        %v590 = vld [vmem:[%s587 + $0x10] sm:$0xff]
        %v591 = vld [vmem:[%s587 + $0x18] sm:$0xff]
        %v592 = vld [vmem:[%s587 + $0x20] sm:$0xff]
        %v593 = vld [vmem:[%s587 + $0x28] sm:$0xff]
        %v594 = vld [vmem:[%s587 + $0x30] sm:$0xff]
        %v595 = vld [vmem:[%s587 + $0x38] sm:$0xff]
        %v596 = vld [vmem:[%s587 + $0x40] sm:$0xff]
        %v597 = vld [vmem:[%s587 + $0x48] sm:$0xff]
        %v598 = vld [vmem:[%s587 + $0x50] sm:$0xff]
        %v599 = vld [vmem:[%s587 + $0x58] sm:$0xff]
        %v600 = vld [vmem:[%s587 + $0x60] sm:$0xff]
        %v601 = vld [vmem:[%s587 + $0x68] sm:$0xff]
        %v602 = vld [vmem:[%s587 + $0x70] sm:$0xff]
        %v603 = vld [vmem:[%s587 + $0x78] sm:$0xff]
        %v604 = vld [vmem:[%s587 + $0x80] sm:$0xff]
        %v605 = vld [vmem:[%s587 + $0x88] sm:$0xff]
        %v606 = vld [vmem:[%s587 + $0x90] sm:$0xff]
        %v607 = vld [vmem:[%s587 + $0x98] sm:$0xff]
        %v608 = vld [vmem:[%s587 + $0xa0] sm:$0xff]
        %v609 = vld [vmem:[%s587 + $0xa8] sm:$0xff]
        %v610 = vld [vmem:[%s587 + $0xb0] sm:$0xff]
        %v611 = vld [vmem:[%s587 + $0xb8] sm:$0xff]
        %v612 = vld [vmem:[%s587 + $0xc0] sm:$0xff]
        %v613 = vld [vmem:[%s587 + $0xc8] sm:$0xff]
        %v614 = vld [vmem:[%s587 + $0xd0] sm:$0xff]
        %v615 = vld [vmem:[%s587 + $0xd8] sm:$0xff]
        %v616 = vld [vmem:[%s587 + $0xe0] sm:$0xff]
        %v617 = vld [vmem:[%s587 + $0xe8] sm:$0xff]
        %v618 = vld [vmem:[%s587 + $0xf0] sm:$0xff]
        %v619 = vld [vmem:[%s587 + $0xf8] sm:$0xff]
        %v621 = vrot.slane %v462, 1
        %623 = vmatprep.subr.mxu0 %v589
        %624 = vmatpush1.msra.mxu0 %v588
        %625 = vmatprep.subr.mxu0 %v591
        %626 = vmatpush1.msra.mxu0 %v590
        %627 = vmatprep.subr.mxu0 %v593
        %628 = vmatpush1.msra.mxu0 %v592
        %629 = vmatprep.subr.mxu0 %v595
        %630 = vmatpush1.msra.mxu0 %v594
        %631 = vmatprep.subr.mxu0 %v597
        %632 = vmatpush1.msra.mxu0 %v596
        %633 = vmatprep.subr.mxu0 %v599
        %634 = vmatpush1.msra.mxu0 %v598
        %635 = vmatprep.subr.mxu0 %v601
        %636 = vmatpush1.msra.mxu0 %v600
        %637 = vmatprep.subr.mxu0 %v603
        %638 = vmatpush1.msra.mxu0 %v602
        %639 = vmatprep.subr.mxu0 %v605
        %640 = vmatpush1.msra.mxu0 %v604
        %641 = vmatprep.subr.mxu0 %v607
        %642 = vmatpush1.msra.mxu0 %v606
        %643 = vmatprep.subr.mxu0 %v609
        %644 = vmatpush1.msra.mxu0 %v608
        %645 = vmatprep.subr.mxu0 %v611
        %646 = vmatpush1.msra.mxu0 %v610
        %647 = vmatprep.subr.mxu0 %v613
        %648 = vmatpush1.msra.mxu0 %v612
        %649 = vmatprep.subr.mxu0 %v615
        %650 = vmatpush1.msra.mxu0 %v614
        %651 = vmatprep.subr.mxu0 %v617
        %652 = vmatpush1.msra.mxu0 %v616
        %653 = vmatprep.subr.mxu0 %v619
        %654 = vmatpush1.msra.mxu0 %v618
        %655 = vmatprep.subr.mxu0 0.0
        %656 = vmatpush1.msra.mxu0 0.0
        %657 = vmatprep.subr.mxu0 0.0
        %658 = vmatpush1.msra.mxu0 0.0
        %659 = vmatprep.subr.mxu0 0.0
        %660 = vmatpush1.msra.mxu0 0.0
        %661 = vmatprep.subr.mxu0 0.0
        %662 = vmatpush1.msra.mxu0 0.0
        %663 = vmatprep.subr.mxu0 0.0
        %664 = vmatpush1.msra.mxu0 0.0
        %665 = vmatprep.subr.mxu0 0.0
        %666 = vmatpush1.msra.mxu0 0.0
        %667 = vmatprep.subr.mxu0 0.0
        %668 = vmatpush1.msra.mxu0 0.0
        %669 = vmatprep.subr.mxu0 0.0
        %670 = vmatpush1.msra.mxu0 0.0
        %671 = vmatprep.subr.mxu0 0.0
        %672 = vmatpush1.msra.mxu0 0.0
        %673 = vmatprep.subr.mxu0 0.0
        %674 = vmatpush1.msra.mxu0 0.0
        %675 = vmatprep.subr.mxu0 0.0
        %676 = vmatpush1.msra.mxu0 0.0
        %677 = vmatprep.subr.mxu0 0.0
        %678 = vmatpush1.msra.mxu0 0.0
        %679 = vmatprep.subr.mxu0 0.0
        %680 = vmatpush1.msra.mxu0 0.0
        %681 = vmatprep.subr.mxu0 0.0
        %682 = vmatpush1.msra.mxu0 0.0
        %683 = vmatprep.subr.mxu0 0.0
        %684 = vmatpush1.msra.mxu0 0.0
        %685 = vmatprep.subr.mxu0 0.0
        %686 = vmatpush1.msra.mxu0 0.0
        %687 = vmatprep.mubr.f32.mxu0 0.0
        %688 = vmatmul.mubr.f32.gmra.mrb[0].mxu0 %v621
        %v689 = vpop.f32.mrb[0].mxu0
        %v690 = vadd.f32 0.0, %v689
        %v691 = vpop.f32.mrb[0].mxu0
        %v692 = vadd.f32 0.0, %v691
        %693 = vdwg.mxu0
        %v696 = vcombine.low %v690, %v692
        %v698 = vunpack.c.l.s4 1966171168
        %v699 = vunpack.c.0.s8 %v698
        %v700 = vlaneseq
        %v701 = vshrl.u32 %v700, 7
        %v702 = vsub.s32 %v699, %v701
        %v703 = vrot.slane %v696, %v702
        %v705 = vunpack.c.l.s4 1966171168
        %v706 = vunpack.c.0.s8 %v705
        %v707 = vlaneseq
        %v708 = vshrl.u32 %v707, 7
        %v709 = vsub.s32 %v706, %v708
        %v710 = vrot.slane %v703, %v709
        %v712 = vadd.f32 %v586, %v710
        %s713 = scalar_lea.vmem [#allocation9], 512
        %v714 = vld [vmem:[%s713] sm:$0xff]
        %v715 = vld [vmem:[%s713 + $0x8] sm:$0xff]
        %v716 = vld [vmem:[%s713 + $0x10] sm:$0xff]
        %v717 = vld [vmem:[%s713 + $0x18] sm:$0xff]
        %v718 = vld [vmem:[%s713 + $0x20] sm:$0xff]
        %v719 = vld [vmem:[%s713 + $0x28] sm:$0xff]
        %v720 = vld [vmem:[%s713 + $0x30] sm:$0xff]
        %v721 = vld [vmem:[%s713 + $0x38] sm:$0xff]
        %v722 = vld [vmem:[%s713 + $0x40] sm:$0xff]
        %v723 = vld [vmem:[%s713 + $0x48] sm:$0xff]
        %v724 = vld [vmem:[%s713 + $0x50] sm:$0xff]
        %v725 = vld [vmem:[%s713 + $0x58] sm:$0xff]
        %v726 = vld [vmem:[%s713 + $0x60] sm:$0xff]
        %v727 = vld [vmem:[%s713 + $0x68] sm:$0xff]
        %v728 = vld [vmem:[%s713 + $0x70] sm:$0xff]
        %v729 = vld [vmem:[%s713 + $0x78] sm:$0xff]
        %v730 = vld [vmem:[%s713 + $0x80] sm:$0xff]
        %v731 = vld [vmem:[%s713 + $0x88] sm:$0xff]
        %v732 = vld [vmem:[%s713 + $0x90] sm:$0xff]
        %v733 = vld [vmem:[%s713 + $0x98] sm:$0xff]
        %v734 = vld [vmem:[%s713 + $0xa0] sm:$0xff]
        %v735 = vld [vmem:[%s713 + $0xa8] sm:$0xff]
        %v736 = vld [vmem:[%s713 + $0xb0] sm:$0xff]
        %v737 = vld [vmem:[%s713 + $0xb8] sm:$0xff]
        %v738 = vld [vmem:[%s713 + $0xc0] sm:$0xff]
        %v739 = vld [vmem:[%s713 + $0xc8] sm:$0xff]
        %v740 = vld [vmem:[%s713 + $0xd0] sm:$0xff]
        %v741 = vld [vmem:[%s713 + $0xd8] sm:$0xff]
        %v742 = vld [vmem:[%s713 + $0xe0] sm:$0xff]
        %v743 = vld [vmem:[%s713 + $0xe8] sm:$0xff]
        %v744 = vld [vmem:[%s713 + $0xf0] sm:$0xff]
        %v745 = vld [vmem:[%s713 + $0xf8] sm:$0xff]
        %v746 = vrot.slane %v462, 2
        %748 = vmatprep.subr.mxu0 %v715
        %749 = vmatpush1.msra.mxu0 %v714
        %750 = vmatprep.subr.mxu0 %v717
        %751 = vmatpush1.msra.mxu0 %v716
        %752 = vmatprep.subr.mxu0 %v719
        %753 = vmatpush1.msra.mxu0 %v718
        %754 = vmatprep.subr.mxu0 %v721
        %755 = vmatpush1.msra.mxu0 %v720
        %756 = vmatprep.subr.mxu0 %v723
        %757 = vmatpush1.msra.mxu0 %v722
        %758 = vmatprep.subr.mxu0 %v725
        %759 = vmatpush1.msra.mxu0 %v724
        %760 = vmatprep.subr.mxu0 %v727
        %761 = vmatpush1.msra.mxu0 %v726
        %762 = vmatprep.subr.mxu0 %v729
        %763 = vmatpush1.msra.mxu0 %v728
        %764 = vmatprep.subr.mxu0 %v731
        %765 = vmatpush1.msra.mxu0 %v730
        %766 = vmatprep.subr.mxu0 %v733
        %767 = vmatpush1.msra.mxu0 %v732
        %768 = vmatprep.subr.mxu0 %v735
        %769 = vmatpush1.msra.mxu0 %v734
        %770 = vmatprep.subr.mxu0 %v737
        %771 = vmatpush1.msra.mxu0 %v736
        %772 = vmatprep.subr.mxu0 %v739
        %773 = vmatpush1.msra.mxu0 %v738
        %774 = vmatprep.subr.mxu0 %v741
        %775 = vmatpush1.msra.mxu0 %v740
        %776 = vmatprep.subr.mxu0 %v743
        %777 = vmatpush1.msra.mxu0 %v742
        %778 = vmatprep.subr.mxu0 %v745
        %779 = vmatpush1.msra.mxu0 %v744
        %780 = vmatprep.subr.mxu0 0.0
        %781 = vmatpush1.msra.mxu0 0.0
        %782 = vmatprep.subr.mxu0 0.0
        %783 = vmatpush1.msra.mxu0 0.0
        %784 = vmatprep.subr.mxu0 0.0
        %785 = vmatpush1.msra.mxu0 0.0
        %786 = vmatprep.subr.mxu0 0.0
        %787 = vmatpush1.msra.mxu0 0.0
        %788 = vmatprep.subr.mxu0 0.0
        %789 = vmatpush1.msra.mxu0 0.0
        %790 = vmatprep.subr.mxu0 0.0
        %791 = vmatpush1.msra.mxu0 0.0
        %792 = vmatprep.subr.mxu0 0.0
        %793 = vmatpush1.msra.mxu0 0.0
        %794 = vmatprep.subr.mxu0 0.0
        %795 = vmatpush1.msra.mxu0 0.0
        %796 = vmatprep.subr.mxu0 0.0
        %797 = vmatpush1.msra.mxu0 0.0
        %798 = vmatprep.subr.mxu0 0.0
        %799 = vmatpush1.msra.mxu0 0.0
        %800 = vmatprep.subr.mxu0 0.0
        %801 = vmatpush1.msra.mxu0 0.0
        %802 = vmatprep.subr.mxu0 0.0
        %803 = vmatpush1.msra.mxu0 0.0
        %804 = vmatprep.subr.mxu0 0.0
        %805 = vmatpush1.msra.mxu0 0.0
        %806 = vmatprep.subr.mxu0 0.0
        %807 = vmatpush1.msra.mxu0 0.0
        %808 = vmatprep.subr.mxu0 0.0
        %809 = vmatpush1.msra.mxu0 0.0
        %810 = vmatprep.subr.mxu0 0.0
        %811 = vmatpush1.msra.mxu0 0.0
        %812 = vmatprep.mubr.f32.mxu0 0.0
        %813 = vmatmul.mubr.f32.gmra.mrb[0].mxu0 %v746
        %v814 = vpop.f32.mrb[0].mxu0
        %v815 = vadd.f32 0.0, %v814
        %v816 = vpop.f32.mrb[0].mxu0
        %v817 = vadd.f32 0.0, %v816
        %818 = vdwg.mxu0
        %v821 = vcombine.low %v815, %v817
        %v823 = vunpack.c.l.s4 1966171168
        %v824 = vunpack.c.0.s8 %v823
        %v825 = vlaneseq
        %v826 = vshrl.u32 %v825, 7
        %v827 = vsub.s32 %v824, %v826
        %v828 = vrot.slane %v821, %v827
        %v830 = vunpack.c.l.s4 1966171168
        %v831 = vunpack.c.0.s8 %v830
        %v832 = vlaneseq
        %v833 = vshrl.u32 %v832, 7
        %v834 = vsub.s32 %v831, %v833
        %v835 = vrot.slane %v828, %v834
        %v837 = vadd.f32 %v712, %v835
        %s838 = scalar_lea.vmem [#allocation9], 768
        %v839 = vld [vmem:[%s838] sm:$0xff]
        %v840 = vld [vmem:[%s838 + $0x8] sm:$0xff]
        %v841 = vld [vmem:[%s838 + $0x10] sm:$0xff]
        %v842 = vld [vmem:[%s838 + $0x18] sm:$0xff]
        %v843 = vld [vmem:[%s838 + $0x20] sm:$0xff]
        %v844 = vld [vmem:[%s838 + $0x28] sm:$0xff]
        %v845 = vld [vmem:[%s838 + $0x30] sm:$0xff]
        %v846 = vld [vmem:[%s838 + $0x38] sm:$0xff]
        %v847 = vld [vmem:[%s838 + $0x40] sm:$0xff]
        %v848 = vld [vmem:[%s838 + $0x48] sm:$0xff]
        %v849 = vld [vmem:[%s838 + $0x50] sm:$0xff]
        %v850 = vld [vmem:[%s838 + $0x58] sm:$0xff]
        %v851 = vld [vmem:[%s838 + $0x60] sm:$0xff]
        %v852 = vld [vmem:[%s838 + $0x68] sm:$0xff]
        %v853 = vld [vmem:[%s838 + $0x70] sm:$0xff]
        %v854 = vld [vmem:[%s838 + $0x78] sm:$0xff]
        %v855 = vld [vmem:[%s838 + $0x80] sm:$0xff]
        %v856 = vld [vmem:[%s838 + $0x88] sm:$0xff]
        %v857 = vld [vmem:[%s838 + $0x90] sm:$0xff]
        %v858 = vld [vmem:[%s838 + $0x98] sm:$0xff]
        %v859 = vld [vmem:[%s838 + $0xa0] sm:$0xff]
        %v860 = vld [vmem:[%s838 + $0xa8] sm:$0xff]
        %v861 = vld [vmem:[%s838 + $0xb0] sm:$0xff]
        %v862 = vld [vmem:[%s838 + $0xb8] sm:$0xff]
        %v863 = vld [vmem:[%s838 + $0xc0] sm:$0xff]
        %v864 = vld [vmem:[%s838 + $0xc8] sm:$0xff]
        %v865 = vld [vmem:[%s838 + $0xd0] sm:$0xff]
        %v866 = vld [vmem:[%s838 + $0xd8] sm:$0xff]
        %v867 = vld [vmem:[%s838 + $0xe0] sm:$0xff]
        %v868 = vld [vmem:[%s838 + $0xe8] sm:$0xff]
        %v869 = vld [vmem:[%s838 + $0xf0] sm:$0xff]
        %v870 = vld [vmem:[%s838 + $0xf8] sm:$0xff]
        %v871 = vrot.slane %v462, 3
        %873 = vmatprep.subr.mxu0 %v840
        %874 = vmatpush1.msra.mxu0 %v839
        %875 = vmatprep.subr.mxu0 %v842
        %876 = vmatpush1.msra.mxu0 %v841
        %877 = vmatprep.subr.mxu0 %v844
        %878 = vmatpush1.msra.mxu0 %v843
        %879 = vmatprep.subr.mxu0 %v846
        %880 = vmatpush1.msra.mxu0 %v845
        %881 = vmatprep.subr.mxu0 %v848
        %882 = vmatpush1.msra.mxu0 %v847
        %883 = vmatprep.subr.mxu0 %v850
        %884 = vmatpush1.msra.mxu0 %v849
        %885 = vmatprep.subr.mxu0 %v852
        %886 = vmatpush1.msra.mxu0 %v851
        %887 = vmatprep.subr.mxu0 %v854
        %888 = vmatpush1.msra.mxu0 %v853
        %889 = vmatprep.subr.mxu0 %v856
        %890 = vmatpush1.msra.mxu0 %v855
        %891 = vmatprep.subr.mxu0 %v858
        %892 = vmatpush1.msra.mxu0 %v857
        %893 = vmatprep.subr.mxu0 %v860
        %894 = vmatpush1.msra.mxu0 %v859
        %895 = vmatprep.subr.mxu0 %v862
        %896 = vmatpush1.msra.mxu0 %v861
        %897 = vmatprep.subr.mxu0 %v864
        %898 = vmatpush1.msra.mxu0 %v863
        %899 = vmatprep.subr.mxu0 %v866
        %900 = vmatpush1.msra.mxu0 %v865
        %901 = vmatprep.subr.mxu0 %v868
        %902 = vmatpush1.msra.mxu0 %v867
        %903 = vmatprep.subr.mxu0 %v870
        %904 = vmatpush1.msra.mxu0 %v869
        %905 = vmatprep.subr.mxu0 0.0
        %906 = vmatpush1.msra.mxu0 0.0
        %907 = vmatprep.subr.mxu0 0.0
        %908 = vmatpush1.msra.mxu0 0.0
        %909 = vmatprep.subr.mxu0 0.0
        %910 = vmatpush1.msra.mxu0 0.0
        %911 = vmatprep.subr.mxu0 0.0
        %912 = vmatpush1.msra.mxu0 0.0
        %913 = vmatprep.subr.mxu0 0.0
        %914 = vmatpush1.msra.mxu0 0.0
        %915 = vmatprep.subr.mxu0 0.0
        %916 = vmatpush1.msra.mxu0 0.0
        %917 = vmatprep.subr.mxu0 0.0
        %918 = vmatpush1.msra.mxu0 0.0
        %919 = vmatprep.subr.mxu0 0.0
        %920 = vmatpush1.msra.mxu0 0.0
        %921 = vmatprep.subr.mxu0 0.0
        %922 = vmatpush1.msra.mxu0 0.0
        %923 = vmatprep.subr.mxu0 0.0
        %924 = vmatpush1.msra.mxu0 0.0
        %925 = vmatprep.subr.mxu0 0.0
        %926 = vmatpush1.msra.mxu0 0.0
        %927 = vmatprep.subr.mxu0 0.0
        %928 = vmatpush1.msra.mxu0 0.0
        %929 = vmatprep.subr.mxu0 0.0
        %930 = vmatpush1.msra.mxu0 0.0
        %931 = vmatprep.subr.mxu0 0.0
        %932 = vmatpush1.msra.mxu0 0.0
        %933 = vmatprep.subr.mxu0 0.0
        %934 = vmatpush1.msra.mxu0 0.0
        %935 = vmatprep.subr.mxu0 0.0
        %936 = vmatpush1.msra.mxu0 0.0
        %937 = vmatprep.mubr.f32.mxu0 0.0
        %938 = vmatmul.mubr.f32.gmra.mrb[0].mxu0 %v871
        %v939 = vpop.f32.mrb[0].mxu0
        %v940 = vadd.f32 0.0, %v939
        %v941 = vpop.f32.mrb[0].mxu0
        %v942 = vadd.f32 0.0, %v941
        %943 = vdwg.mxu0
        %v946 = vcombine.low %v940, %v942
        %v948 = vunpack.c.l.s4 1966171168
        %v949 = vunpack.c.0.s8 %v948
        %v950 = vlaneseq
        %v951 = vshrl.u32 %v950, 7
        %v952 = vsub.s32 %v949, %v951
        %v953 = vrot.slane %v946, %v952
        %v955 = vunpack.c.l.s4 1966171168
        %v956 = vunpack.c.0.s8 %v955
        %v957 = vlaneseq
        %v958 = vshrl.u32 %v957, 7
        %v959 = vsub.s32 %v956, %v958
        %v960 = vrot.slane %v953, %v959
        %v962 = vadd.f32 %v837, %v960
        %s963 = scalar_lea.vmem [#allocation9], 1024
        %v964 = vld [vmem:[%s963] sm:$0xff]
        %v965 = vld [vmem:[%s963 + $0x8] sm:$0xff]
        %v966 = vld [vmem:[%s963 + $0x10] sm:$0xff]
        %v967 = vld [vmem:[%s963 + $0x18] sm:$0xff]
        %v968 = vld [vmem:[%s963 + $0x20] sm:$0xff]
        %v969 = vld [vmem:[%s963 + $0x28] sm:$0xff]
        %v970 = vld [vmem:[%s963 + $0x30] sm:$0xff]
        %v971 = vld [vmem:[%s963 + $0x38] sm:$0xff]
        %v972 = vld [vmem:[%s963 + $0x40] sm:$0xff]
        %v973 = vld [vmem:[%s963 + $0x48] sm:$0xff]
        %v974 = vld [vmem:[%s963 + $0x50] sm:$0xff]
        %v975 = vld [vmem:[%s963 + $0x58] sm:$0xff]
        %v976 = vld [vmem:[%s963 + $0x60] sm:$0xff]
        %v977 = vld [vmem:[%s963 + $0x68] sm:$0xff]
        %v978 = vld [vmem:[%s963 + $0x70] sm:$0xff]
        %v979 = vld [vmem:[%s963 + $0x78] sm:$0xff]
        %v980 = vld [vmem:[%s963 + $0x80] sm:$0xff]
        %v981 = vld [vmem:[%s963 + $0x88] sm:$0xff]
        %v982 = vld [vmem:[%s963 + $0x90] sm:$0xff]
        %v983 = vld [vmem:[%s963 + $0x98] sm:$0xff]
        %v984 = vld [vmem:[%s963 + $0xa0] sm:$0xff]
        %v985 = vld [vmem:[%s963 + $0xa8] sm:$0xff]
        %v986 = vld [vmem:[%s963 + $0xb0] sm:$0xff]
        %v987 = vld [vmem:[%s963 + $0xb8] sm:$0xff]
        %v988 = vld [vmem:[%s963 + $0xc0] sm:$0xff]
        %v989 = vld [vmem:[%s963 + $0xc8] sm:$0xff]
        %v990 = vld [vmem:[%s963 + $0xd0] sm:$0xff]
        %v991 = vld [vmem:[%s963 + $0xd8] sm:$0xff]
        %v992 = vld [vmem:[%s963 + $0xe0] sm:$0xff]
        %v993 = vld [vmem:[%s963 + $0xe8] sm:$0xff]
        %v994 = vld [vmem:[%s963 + $0xf0] sm:$0xff]
        %v995 = vld [vmem:[%s963 + $0xf8] sm:$0xff]
        %v996 = vrot.slane %v462, 4
        %998 = vmatprep.subr.mxu0 %v965
        %999 = vmatpush1.msra.mxu0 %v964
        %1000 = vmatprep.subr.mxu0 %v967
        %1001 = vmatpush1.msra.mxu0 %v966
        %1002 = vmatprep.subr.mxu0 %v969
        %1003 = vmatpush1.msra.mxu0 %v968
        %1004 = vmatprep.subr.mxu0 %v971
        %1005 = vmatpush1.msra.mxu0 %v970
        %1006 = vmatprep.subr.mxu0 %v973
        %1007 = vmatpush1.msra.mxu0 %v972
        %1008 = vmatprep.subr.mxu0 %v975
        %1009 = vmatpush1.msra.mxu0 %v974
        %1010 = vmatprep.subr.mxu0 %v977
        %1011 = vmatpush1.msra.mxu0 %v976
        %1012 = vmatprep.subr.mxu0 %v979
        %1013 = vmatpush1.msra.mxu0 %v978
        %1014 = vmatprep.subr.mxu0 %v981
        %1015 = vmatpush1.msra.mxu0 %v980
        %1016 = vmatprep.subr.mxu0 %v983
        %1017 = vmatpush1.msra.mxu0 %v982
        %1018 = vmatprep.subr.mxu0 %v985
        %1019 = vmatpush1.msra.mxu0 %v984
        %1020 = vmatprep.subr.mxu0 %v987
        %1021 = vmatpush1.msra.mxu0 %v986
        %1022 = vmatprep.subr.mxu0 %v989
        %1023 = vmatpush1.msra.mxu0 %v988
        %1024 = vmatprep.subr.mxu0 %v991
        %1025 = vmatpush1.msra.mxu0 %v990
        %1026 = vmatprep.subr.mxu0 %v993
        %1027 = vmatpush1.msra.mxu0 %v992
        %1028 = vmatprep.subr.mxu0 %v995
        %1029 = vmatpush1.msra.mxu0 %v994
        %1030 = vmatprep.subr.mxu0 0.0
        %1031 = vmatpush1.msra.mxu0 0.0
        %1032 = vmatprep.subr.mxu0 0.0
        %1033 = vmatpush1.msra.mxu0 0.0
        %1034 = vmatprep.subr.mxu0 0.0
        %1035 = vmatpush1.msra.mxu0 0.0
        %1036 = vmatprep.subr.mxu0 0.0
        %1037 = vmatpush1.msra.mxu0 0.0
        %1038 = vmatprep.subr.mxu0 0.0
        %1039 = vmatpush1.msra.mxu0 0.0
        %1040 = vmatprep.subr.mxu0 0.0
        %1041 = vmatpush1.msra.mxu0 0.0
        %1042 = vmatprep.subr.mxu0 0.0
        %1043 = vmatpush1.msra.mxu0 0.0
        %1044 = vmatprep.subr.mxu0 0.0
        %1045 = vmatpush1.msra.mxu0 0.0
        %1046 = vmatprep.subr.mxu0 0.0
        %1047 = vmatpush1.msra.mxu0 0.0
        %1048 = vmatprep.subr.mxu0 0.0
        %1049 = vmatpush1.msra.mxu0 0.0
        %1050 = vmatprep.subr.mxu0 0.0
        %1051 = vmatpush1.msra.mxu0 0.0
        %1052 = vmatprep.subr.mxu0 0.0
        %1053 = vmatpush1.msra.mxu0 0.0
        %1054 = vmatprep.subr.mxu0 0.0
        %1055 = vmatpush1.msra.mxu0 0.0
        %1056 = vmatprep.subr.mxu0 0.0
        %1057 = vmatpush1.msra.mxu0 0.0
        %1058 = vmatprep.subr.mxu0 0.0
        %1059 = vmatpush1.msra.mxu0 0.0
        %1060 = vmatprep.subr.mxu0 0.0
        %1061 = vmatpush1.msra.mxu0 0.0
        %1062 = vmatprep.mubr.f32.mxu0 0.0
        %1063 = vmatmul.mubr.f32.gmra.mrb[0].mxu0 %v996
        %v1064 = vpop.f32.mrb[0].mxu0
        %v1065 = vadd.f32 0.0, %v1064
        %v1066 = vpop.f32.mrb[0].mxu0
        %v1067 = vadd.f32 0.0, %v1066
        %1068 = vdwg.mxu0
        %v1071 = vcombine.low %v1065, %v1067
        %v1073 = vunpack.c.l.s4 1966171168
        %v1074 = vunpack.c.0.s8 %v1073
        %v1075 = vlaneseq
        %v1076 = vshrl.u32 %v1075, 7
        %v1077 = vsub.s32 %v1074, %v1076
        %v1078 = vrot.slane %v1071, %v1077
        %v1080 = vunpack.c.l.s4 1966171168
        %v1081 = vunpack.c.0.s8 %v1080
        %v1082 = vlaneseq
        %v1083 = vshrl.u32 %v1082, 7
        %v1084 = vsub.s32 %v1081, %v1083
        %v1085 = vrot.slane %v1078, %v1084
        %v1087 = vadd.f32 %v962, %v1085
        %s1088 = scalar_lea.vmem [#allocation9], 1280
        %v1089 = vld [vmem:[%s1088] sm:$0xff]
        %v1090 = vld [vmem:[%s1088 + $0x8] sm:$0xff]
        %v1091 = vld [vmem:[%s1088 + $0x10] sm:$0xff]
        %v1092 = vld [vmem:[%s1088 + $0x18] sm:$0xff]
        %v1093 = vld [vmem:[%s1088 + $0x20] sm:$0xff]
        %v1094 = vld [vmem:[%s1088 + $0x28] sm:$0xff]
        %v1095 = vld [vmem:[%s1088 + $0x30] sm:$0xff]
        %v1096 = vld [vmem:[%s1088 + $0x38] sm:$0xff]
        %v1097 = vld [vmem:[%s1088 + $0x40] sm:$0xff]
        %v1098 = vld [vmem:[%s1088 + $0x48] sm:$0xff]
        %v1099 = vld [vmem:[%s1088 + $0x50] sm:$0xff]
        %v1100 = vld [vmem:[%s1088 + $0x58] sm:$0xff]
        %v1101 = vld [vmem:[%s1088 + $0x60] sm:$0xff]
        %v1102 = vld [vmem:[%s1088 + $0x68] sm:$0xff]
        %v1103 = vld [vmem:[%s1088 + $0x70] sm:$0xff]
        %v1104 = vld [vmem:[%s1088 + $0x78] sm:$0xff]
        %v1105 = vld [vmem:[%s1088 + $0x80] sm:$0xff]
        %v1106 = vld [vmem:[%s1088 + $0x88] sm:$0xff]
        %v1107 = vld [vmem:[%s1088 + $0x90] sm:$0xff]
        %v1108 = vld [vmem:[%s1088 + $0x98] sm:$0xff]
        %v1109 = vld [vmem:[%s1088 + $0xa0] sm:$0xff]
        %v1110 = vld [vmem:[%s1088 + $0xa8] sm:$0xff]
        %v1111 = vld [vmem:[%s1088 + $0xb0] sm:$0xff]
        %v1112 = vld [vmem:[%s1088 + $0xb8] sm:$0xff]
        %v1113 = vld [vmem:[%s1088 + $0xc0] sm:$0xff]
        %v1114 = vld [vmem:[%s1088 + $0xc8] sm:$0xff]
        %v1115 = vld [vmem:[%s1088 + $0xd0] sm:$0xff]
        %v1116 = vld [vmem:[%s1088 + $0xd8] sm:$0xff]
        %v1117 = vld [vmem:[%s1088 + $0xe0] sm:$0xff]
        %v1118 = vld [vmem:[%s1088 + $0xe8] sm:$0xff]
        %v1119 = vld [vmem:[%s1088 + $0xf0] sm:$0xff]
        %v1120 = vld [vmem:[%s1088 + $0xf8] sm:$0xff]
        %v1121 = vrot.slane %v462, 5
        %1123 = vmatprep.subr.mxu0 %v1090
        %1124 = vmatpush1.msra.mxu0 %v1089
        %1125 = vmatprep.subr.mxu0 %v1092
        %1126 = vmatpush1.msra.mxu0 %v1091
        %1127 = vmatprep.subr.mxu0 %v1094
        %1128 = vmatpush1.msra.mxu0 %v1093
        %1129 = vmatprep.subr.mxu0 %v1096
        %1130 = vmatpush1.msra.mxu0 %v1095
        %1131 = vmatprep.subr.mxu0 %v1098
        %1132 = vmatpush1.msra.mxu0 %v1097
        %1133 = vmatprep.subr.mxu0 %v1100
        %1134 = vmatpush1.msra.mxu0 %v1099
        %1135 = vmatprep.subr.mxu0 %v1102
        %1136 = vmatpush1.msra.mxu0 %v1101
        %1137 = vmatprep.subr.mxu0 %v1104
        %1138 = vmatpush1.msra.mxu0 %v1103
        %1139 = vmatprep.subr.mxu0 %v1106
        %1140 = vmatpush1.msra.mxu0 %v1105
        %1141 = vmatprep.subr.mxu0 %v1108
        %1142 = vmatpush1.msra.mxu0 %v1107
        %1143 = vmatprep.subr.mxu0 %v1110
        %1144 = vmatpush1.msra.mxu0 %v1109
        %1145 = vmatprep.subr.mxu0 %v1112
        %1146 = vmatpush1.msra.mxu0 %v1111
        %1147 = vmatprep.subr.mxu0 %v1114
        %1148 = vmatpush1.msra.mxu0 %v1113
        %1149 = vmatprep.subr.mxu0 %v1116
        %1150 = vmatpush1.msra.mxu0 %v1115
        %1151 = vmatprep.subr.mxu0 %v1118
        %1152 = vmatpush1.msra.mxu0 %v1117
        %1153 = vmatprep.subr.mxu0 %v1120
        %1154 = vmatpush1.msra.mxu0 %v1119
        %1155 = vmatprep.subr.mxu0 0.0
        %1156 = vmatpush1.msra.mxu0 0.0
        %1157 = vmatprep.subr.mxu0 0.0
        %1158 = vmatpush1.msra.mxu0 0.0
        %1159 = vmatprep.subr.mxu0 0.0
        %1160 = vmatpush1.msra.mxu0 0.0
        %1161 = vmatprep.subr.mxu0 0.0
        %1162 = vmatpush1.msra.mxu0 0.0
        %1163 = vmatprep.subr.mxu0 0.0
        %1164 = vmatpush1.msra.mxu0 0.0
        %1165 = vmatprep.subr.mxu0 0.0
        %1166 = vmatpush1.msra.mxu0 0.0
        %1167 = vmatprep.subr.mxu0 0.0
        %1168 = vmatpush1.msra.mxu0 0.0
        %1169 = vmatprep.subr.mxu0 0.0
        %1170 = vmatpush1.msra.mxu0 0.0
        %1171 = vmatprep.subr.mxu0 0.0
        %1172 = vmatpush1.msra.mxu0 0.0
        %1173 = vmatprep.subr.mxu0 0.0
        %1174 = vmatpush1.msra.mxu0 0.0
        %1175 = vmatprep.subr.mxu0 0.0
        %1176 = vmatpush1.msra.mxu0 0.0
        %1177 = vmatprep.subr.mxu0 0.0
        %1178 = vmatpush1.msra.mxu0 0.0
        %1179 = vmatprep.subr.mxu0 0.0
        %1180 = vmatpush1.msra.mxu0 0.0
        %1181 = vmatprep.subr.mxu0 0.0
        %1182 = vmatpush1.msra.mxu0 0.0
        %1183 = vmatprep.subr.mxu0 0.0
        %1184 = vmatpush1.msra.mxu0 0.0
        %1185 = vmatprep.subr.mxu0 0.0
        %1186 = vmatpush1.msra.mxu0 0.0
        %1187 = vmatprep.mubr.f32.mxu0 0.0
        %1188 = vmatmul.mubr.f32.gmra.mrb[0].mxu0 %v1121
        %v1189 = vpop.f32.mrb[0].mxu0
        %v1190 = vadd.f32 0.0, %v1189
        %v1191 = vpop.f32.mrb[0].mxu0
        %v1192 = vadd.f32 0.0, %v1191
        %1193 = vdwg.mxu0
        %v1196 = vcombine.low %v1190, %v1192
        %v1198 = vunpack.c.l.s4 1966171168
        %v1199 = vunpack.c.0.s8 %v1198
        %v1200 = vlaneseq
        %v1201 = vshrl.u32 %v1200, 7
        %v1202 = vsub.s32 %v1199, %v1201
        %v1203 = vrot.slane %v1196, %v1202
        %v1205 = vunpack.c.l.s4 1966171168
        %v1206 = vunpack.c.0.s8 %v1205
        %v1207 = vlaneseq
        %v1208 = vshrl.u32 %v1207, 7
        %v1209 = vsub.s32 %v1206, %v1208
        %v1210 = vrot.slane %v1203, %v1209
        %v1212 = vadd.f32 %v1087, %v1210
        %s1213 = scalar_lea.vmem [#allocation9], 1536
        %v1214 = vld [vmem:[%s1213] sm:$0xff]
        %v1215 = vld [vmem:[%s1213 + $0x8] sm:$0xff]
        %v1216 = vld [vmem:[%s1213 + $0x10] sm:$0xff]
        %v1217 = vld [vmem:[%s1213 + $0x18] sm:$0xff]
        %v1218 = vld [vmem:[%s1213 + $0x20] sm:$0xff]
        %v1219 = vld [vmem:[%s1213 + $0x28] sm:$0xff]
        %v1220 = vld [vmem:[%s1213 + $0x30] sm:$0xff]
        %v1221 = vld [vmem:[%s1213 + $0x38] sm:$0xff]
        %v1222 = vld [vmem:[%s1213 + $0x40] sm:$0xff]
        %v1223 = vld [vmem:[%s1213 + $0x48] sm:$0xff]
        %v1224 = vld [vmem:[%s1213 + $0x50] sm:$0xff]
        %v1225 = vld [vmem:[%s1213 + $0x58] sm:$0xff]
        %v1226 = vld [vmem:[%s1213 + $0x60] sm:$0xff]
        %v1227 = vld [vmem:[%s1213 + $0x68] sm:$0xff]
        %v1228 = vld [vmem:[%s1213 + $0x70] sm:$0xff]
        %v1229 = vld [vmem:[%s1213 + $0x78] sm:$0xff]
        %v1230 = vld [vmem:[%s1213 + $0x80] sm:$0xff]
        %v1231 = vld [vmem:[%s1213 + $0x88] sm:$0xff]
        %v1232 = vld [vmem:[%s1213 + $0x90] sm:$0xff]
        %v1233 = vld [vmem:[%s1213 + $0x98] sm:$0xff]
        %v1234 = vld [vmem:[%s1213 + $0xa0] sm:$0xff]
        %v1235 = vld [vmem:[%s1213 + $0xa8] sm:$0xff]
        %v1236 = vld [vmem:[%s1213 + $0xb0] sm:$0xff]
        %v1237 = vld [vmem:[%s1213 + $0xb8] sm:$0xff]
        %v1238 = vld [vmem:[%s1213 + $0xc0] sm:$0xff]
        %v1239 = vld [vmem:[%s1213 + $0xc8] sm:$0xff]
        %v1240 = vld [vmem:[%s1213 + $0xd0] sm:$0xff]
        %v1241 = vld [vmem:[%s1213 + $0xd8] sm:$0xff]
        %v1242 = vld [vmem:[%s1213 + $0xe0] sm:$0xff]
        %v1243 = vld [vmem:[%s1213 + $0xe8] sm:$0xff]
        %v1244 = vld [vmem:[%s1213 + $0xf0] sm:$0xff]
        %v1245 = vld [vmem:[%s1213 + $0xf8] sm:$0xff]
        %v1246 = vrot.slane %v462, 6
        %1248 = vmatprep.subr.mxu0 %v1215
        %1249 = vmatpush1.msra.mxu0 %v1214
        %1250 = vmatprep.subr.mxu0 %v1217
        %1251 = vmatpush1.msra.mxu0 %v1216
        %1252 = vmatprep.subr.mxu0 %v1219
        %1253 = vmatpush1.msra.mxu0 %v1218
        %1254 = vmatprep.subr.mxu0 %v1221
        %1255 = vmatpush1.msra.mxu0 %v1220
        %1256 = vmatprep.subr.mxu0 %v1223
        %1257 = vmatpush1.msra.mxu0 %v1222
        %1258 = vmatprep.subr.mxu0 %v1225
        %1259 = vmatpush1.msra.mxu0 %v1224
        %1260 = vmatprep.subr.mxu0 %v1227
        %1261 = vmatpush1.msra.mxu0 %v1226
        %1262 = vmatprep.subr.mxu0 %v1229
        %1263 = vmatpush1.msra.mxu0 %v1228
        %1264 = vmatprep.subr.mxu0 %v1231
        %1265 = vmatpush1.msra.mxu0 %v1230
        %1266 = vmatprep.subr.mxu0 %v1233
        %1267 = vmatpush1.msra.mxu0 %v1232
        %1268 = vmatprep.subr.mxu0 %v1235
        %1269 = vmatpush1.msra.mxu0 %v1234
        %1270 = vmatprep.subr.mxu0 %v1237
        %1271 = vmatpush1.msra.mxu0 %v1236
        %1272 = vmatprep.subr.mxu0 %v1239
        %1273 = vmatpush1.msra.mxu0 %v1238
        %1274 = vmatprep.subr.mxu0 %v1241
        %1275 = vmatpush1.msra.mxu0 %v1240
        %1276 = vmatprep.subr.mxu0 %v1243
        %1277 = vmatpush1.msra.mxu0 %v1242
        %1278 = vmatprep.subr.mxu0 %v1245
        %1279 = vmatpush1.msra.mxu0 %v1244
        %1280 = vmatprep.subr.mxu0 0.0
        %1281 = vmatpush1.msra.mxu0 0.0
        %1282 = vmatprep.subr.mxu0 0.0
        %1283 = vmatpush1.msra.mxu0 0.0
        %1284 = vmatprep.subr.mxu0 0.0
        %1285 = vmatpush1.msra.mxu0 0.0
        %1286 = vmatprep.subr.mxu0 0.0
        %1287 = vmatpush1.msra.mxu0 0.0
        %1288 = vmatprep.subr.mxu0 0.0
        %1289 = vmatpush1.msra.mxu0 0.0
        %1290 = vmatprep.subr.mxu0 0.0
        %1291 = vmatpush1.msra.mxu0 0.0
        %1292 = vmatprep.subr.mxu0 0.0
        %1293 = vmatpush1.msra.mxu0 0.0
        %1294 = vmatprep.subr.mxu0 0.0
        %1295 = vmatpush1.msra.mxu0 0.0
        %1296 = vmatprep.subr.mxu0 0.0
        %1297 = vmatpush1.msra.mxu0 0.0
        %1298 = vmatprep.subr.mxu0 0.0
        %1299 = vmatpush1.msra.mxu0 0.0
        %1300 = vmatprep.subr.mxu0 0.0
        %1301 = vmatpush1.msra.mxu0 0.0
        %1302 = vmatprep.subr.mxu0 0.0
        %1303 = vmatpush1.msra.mxu0 0.0
        %1304 = vmatprep.subr.mxu0 0.0
        %1305 = vmatpush1.msra.mxu0 0.0
        %1306 = vmatprep.subr.mxu0 0.0
        %1307 = vmatpush1.msra.mxu0 0.0
        %1308 = vmatprep.subr.mxu0 0.0
        %1309 = vmatpush1.msra.mxu0 0.0
        %1310 = vmatprep.subr.mxu0 0.0
        %1311 = vmatpush1.msra.mxu0 0.0
        %1312 = vmatprep.mubr.f32.mxu0 0.0
        %1313 = vmatmul.mubr.f32.gmra.mrb[0].mxu0 %v1246
        %v1314 = vpop.f32.mrb[0].mxu0
        %v1315 = vadd.f32 0.0, %v1314
        %v1316 = vpop.f32.mrb[0].mxu0
        %v1317 = vadd.f32 0.0, %v1316
        %1318 = vdwg.mxu0
        %v1321 = vcombine.low %v1315, %v1317
        %v1323 = vunpack.c.l.s4 1966171168
        %v1324 = vunpack.c.0.s8 %v1323
        %v1325 = vlaneseq
        %v1326 = vshrl.u32 %v1325, 7
        %v1327 = vsub.s32 %v1324, %v1326
        %v1328 = vrot.slane %v1321, %v1327
        %v1330 = vunpack.c.l.s4 1966171168
        %v1331 = vunpack.c.0.s8 %v1330
        %v1332 = vlaneseq
        %v1333 = vshrl.u32 %v1332, 7
        %v1334 = vsub.s32 %v1331, %v1333
        %v1335 = vrot.slane %v1328, %v1334
        %v1337 = vadd.f32 %v1212, %v1335
        %s1338 = scalar_lea.vmem [#allocation9], 1792
        %v1339 = vld [vmem:[%s1338] sm:$0xff]
        %v1340 = vld [vmem:[%s1338 + $0x8] sm:$0xff]
        %v1341 = vld [vmem:[%s1338 + $0x10] sm:$0xff]
        %v1342 = vld [vmem:[%s1338 + $0x18] sm:$0xff]
        %v1343 = vld [vmem:[%s1338 + $0x20] sm:$0xff]
        %v1344 = vld [vmem:[%s1338 + $0x28] sm:$0xff]
        %v1345 = vld [vmem:[%s1338 + $0x30] sm:$0xff]
        %v1346 = vld [vmem:[%s1338 + $0x38] sm:$0xff]
        %v1347 = vld [vmem:[%s1338 + $0x40] sm:$0xff]
        %v1348 = vld [vmem:[%s1338 + $0x48] sm:$0xff]
        %v1349 = vld [vmem:[%s1338 + $0x50] sm:$0xff]
        %v1350 = vld [vmem:[%s1338 + $0x58] sm:$0xff]
        %v1351 = vld [vmem:[%s1338 + $0x60] sm:$0xff]
        %v1352 = vld [vmem:[%s1338 + $0x68] sm:$0xff]
        %v1353 = vld [vmem:[%s1338 + $0x70] sm:$0xff]
        %v1354 = vld [vmem:[%s1338 + $0x78] sm:$0xff]
        %v1355 = vld [vmem:[%s1338 + $0x80] sm:$0xff]
        %v1356 = vld [vmem:[%s1338 + $0x88] sm:$0xff]
        %v1357 = vld [vmem:[%s1338 + $0x90] sm:$0xff]
        %v1358 = vld [vmem:[%s1338 + $0x98] sm:$0xff]
        %v1359 = vld [vmem:[%s1338 + $0xa0] sm:$0xff]
        %v1360 = vld [vmem:[%s1338 + $0xa8] sm:$0xff]
        %v1361 = vld [vmem:[%s1338 + $0xb0] sm:$0xff]
        %v1362 = vld [vmem:[%s1338 + $0xb8] sm:$0xff]
        %v1363 = vld [vmem:[%s1338 + $0xc0] sm:$0xff]
        %v1364 = vld [vmem:[%s1338 + $0xc8] sm:$0xff]
        %v1365 = vld [vmem:[%s1338 + $0xd0] sm:$0xff]
        %v1366 = vld [vmem:[%s1338 + $0xd8] sm:$0xff]
        %v1367 = vld [vmem:[%s1338 + $0xe0] sm:$0xff]
        %v1368 = vld [vmem:[%s1338 + $0xe8] sm:$0xff]
        %v1369 = vld [vmem:[%s1338 + $0xf0] sm:$0xff]
        %v1370 = vld [vmem:[%s1338 + $0xf8] sm:$0xff]
        %v1371 = vrot.slane %v462, 7
        %1373 = vmatprep.subr.mxu0 %v1340
        %1374 = vmatpush1.msra.mxu0 %v1339
        %1375 = vmatprep.subr.mxu0 %v1342
        %1376 = vmatpush1.msra.mxu0 %v1341
        %1377 = vmatprep.subr.mxu0 %v1344
        %1378 = vmatpush1.msra.mxu0 %v1343
        %1379 = vmatprep.subr.mxu0 %v1346
        %1380 = vmatpush1.msra.mxu0 %v1345
        %1381 = vmatprep.subr.mxu0 %v1348
        %1382 = vmatpush1.msra.mxu0 %v1347
        %1383 = vmatprep.subr.mxu0 %v1350
        %1384 = vmatpush1.msra.mxu0 %v1349
        %1385 = vmatprep.subr.mxu0 %v1352
        %1386 = vmatpush1.msra.mxu0 %v1351
        %1387 = vmatprep.subr.mxu0 %v1354
        %1388 = vmatpush1.msra.mxu0 %v1353
        %1389 = vmatprep.subr.mxu0 %v1356
        %1390 = vmatpush1.msra.mxu0 %v1355
        %1391 = vmatprep.subr.mxu0 %v1358
        %1392 = vmatpush1.msra.mxu0 %v1357
        %1393 = vmatprep.subr.mxu0 %v1360
        %1394 = vmatpush1.msra.mxu0 %v1359
        %1395 = vmatprep.subr.mxu0 %v1362
        %1396 = vmatpush1.msra.mxu0 %v1361
        %1397 = vmatprep.subr.mxu0 %v1364
        %1398 = vmatpush1.msra.mxu0 %v1363
        %1399 = vmatprep.subr.mxu0 %v1366
        %1400 = vmatpush1.msra.mxu0 %v1365
        %1401 = vmatprep.subr.mxu0 %v1368
        %1402 = vmatpush1.msra.mxu0 %v1367
        %1403 = vmatprep.subr.mxu0 %v1370
        %1404 = vmatpush1.msra.mxu0 %v1369
        %1405 = vmatprep.subr.mxu0 0.0
        %1406 = vmatpush1.msra.mxu0 0.0
        %1407 = vmatprep.subr.mxu0 0.0
        %1408 = vmatpush1.msra.mxu0 0.0
        %1409 = vmatprep.subr.mxu0 0.0
        %1410 = vmatpush1.msra.mxu0 0.0
        %1411 = vmatprep.subr.mxu0 0.0
        %1412 = vmatpush1.msra.mxu0 0.0
        %1413 = vmatprep.subr.mxu0 0.0
        %1414 = vmatpush1.msra.mxu0 0.0
        %1415 = vmatprep.subr.mxu0 0.0
        %1416 = vmatpush1.msra.mxu0 0.0
        %1417 = vmatprep.subr.mxu0 0.0
        %1418 = vmatpush1.msra.mxu0 0.0
        %1419 = vmatprep.subr.mxu0 0.0
        %1420 = vmatpush1.msra.mxu0 0.0
        %1421 = vmatprep.subr.mxu0 0.0
        %1422 = vmatpush1.msra.mxu0 0.0
        %1423 = vmatprep.subr.mxu0 0.0
        %1424 = vmatpush1.msra.mxu0 0.0
        %1425 = vmatprep.subr.mxu0 0.0
        %1426 = vmatpush1.msra.mxu0 0.0
        %1427 = vmatprep.subr.mxu0 0.0
        %1428 = vmatpush1.msra.mxu0 0.0
        %1429 = vmatprep.subr.mxu0 0.0
        %1430 = vmatpush1.msra.mxu0 0.0
        %1431 = vmatprep.subr.mxu0 0.0
        %1432 = vmatpush1.msra.mxu0 0.0
        %1433 = vmatprep.subr.mxu0 0.0
        %1434 = vmatpush1.msra.mxu0 0.0
        %1435 = vmatprep.subr.mxu0 0.0
        %1436 = vmatpush1.msra.mxu0 0.0
        %1437 = vmatprep.mubr.f32.mxu0 0.0
        %1438 = vmatmul.mubr.f32.gmra.mrb[0].mxu0 %v1371
        %v1439 = vpop.f32.mrb[0].mxu0
        %v1440 = vadd.f32 0.0, %v1439
        %v1441 = vpop.f32.mrb[0].mxu0
        %v1442 = vadd.f32 0.0, %v1441
        %1443 = vdwg.mxu0
        %v1446 = vcombine.low %v1440, %v1442
        %v1448 = vunpack.c.l.s4 1966171168
        %v1449 = vunpack.c.0.s8 %v1448
        %v1450 = vlaneseq
        %v1451 = vshrl.u32 %v1450, 7
        %v1452 = vsub.s32 %v1449, %v1451
        %v1453 = vrot.slane %v1446, %v1452
        %v1455 = vunpack.c.l.s4 1966171168
        %v1456 = vunpack.c.0.s8 %v1455
        %v1457 = vlaneseq
        %v1458 = vshrl.u32 %v1457, 7
        %v1459 = vsub.s32 %v1456, %v1458
        %v1460 = vrot.slane %v1453, %v1459
        %v1462 = vadd.f32 %v1337, %v1460
        %s1463 = scalar_lea.vmem [#allocation9], 2048
        %v1464 = vld [vmem:[%s1463] sm:$0xff]
        %v1465 = vld [vmem:[%s1463 + $0x8] sm:$0xff]
        %v1466 = vld [vmem:[%s1463 + $0x10] sm:$0xff]
        %v1467 = vld [vmem:[%s1463 + $0x18] sm:$0xff]
        %v1468 = vld [vmem:[%s1463 + $0x20] sm:$0xff]
        %v1469 = vld [vmem:[%s1463 + $0x28] sm:$0xff]
        %v1470 = vld [vmem:[%s1463 + $0x30] sm:$0xff]
        %v1471 = vld [vmem:[%s1463 + $0x38] sm:$0xff]
        %v1472 = vld [vmem:[%s1463 + $0x40] sm:$0xff]
        %v1473 = vld [vmem:[%s1463 + $0x48] sm:$0xff]
        %v1474 = vld [vmem:[%s1463 + $0x50] sm:$0xff]
        %v1475 = vld [vmem:[%s1463 + $0x58] sm:$0xff]
        %v1476 = vld [vmem:[%s1463 + $0x60] sm:$0xff]
        %v1477 = vld [vmem:[%s1463 + $0x68] sm:$0xff]
        %v1478 = vld [vmem:[%s1463 + $0x70] sm:$0xff]
        %v1479 = vld [vmem:[%s1463 + $0x78] sm:$0xff]
        %v1480 = vld [vmem:[%s1463 + $0x80] sm:$0xff]
        %v1481 = vld [vmem:[%s1463 + $0x88] sm:$0xff]
        %v1482 = vld [vmem:[%s1463 + $0x90] sm:$0xff]
        %v1483 = vld [vmem:[%s1463 + $0x98] sm:$0xff]
        %v1484 = vld [vmem:[%s1463 + $0xa0] sm:$0xff]
        %v1485 = vld [vmem:[%s1463 + $0xa8] sm:$0xff]
        %v1486 = vld [vmem:[%s1463 + $0xb0] sm:$0xff]
        %v1487 = vld [vmem:[%s1463 + $0xb8] sm:$0xff]
        %v1488 = vld [vmem:[%s1463 + $0xc0] sm:$0xff]
        %v1489 = vld [vmem:[%s1463 + $0xc8] sm:$0xff]
        %v1490 = vld [vmem:[%s1463 + $0xd0] sm:$0xff]
        %v1491 = vld [vmem:[%s1463 + $0xd8] sm:$0xff]
        %v1492 = vld [vmem:[%s1463 + $0xe0] sm:$0xff]
        %v1493 = vld [vmem:[%s1463 + $0xe8] sm:$0xff]
        %v1494 = vld [vmem:[%s1463 + $0xf0] sm:$0xff]
        %v1495 = vld [vmem:[%s1463 + $0xf8] sm:$0xff]
        %1496 = vmatprep.subr.mxu0 %v1465
        %1497 = vmatpush1.msra.mxu0 %v1464
        %1498 = vmatprep.subr.mxu0 %v1467
        %1499 = vmatpush1.msra.mxu0 %v1466
        %1500 = vmatprep.subr.mxu0 %v1469
        %1501 = vmatpush1.msra.mxu0 %v1468
        %1502 = vmatprep.subr.mxu0 %v1471
        %1503 = vmatpush1.msra.mxu0 %v1470
        %1504 = vmatprep.subr.mxu0 %v1473
        %1505 = vmatpush1.msra.mxu0 %v1472
        %1506 = vmatprep.subr.mxu0 %v1475
        %1507 = vmatpush1.msra.mxu0 %v1474
        %1508 = vmatprep.subr.mxu0 %v1477
        %1509 = vmatpush1.msra.mxu0 %v1476
        %1510 = vmatprep.subr.mxu0 %v1479
        %1511 = vmatpush1.msra.mxu0 %v1478
        %1512 = vmatprep.subr.mxu0 %v1481
        %1513 = vmatpush1.msra.mxu0 %v1480
        %1514 = vmatprep.subr.mxu0 %v1483
        %1515 = vmatpush1.msra.mxu0 %v1482
        %1516 = vmatprep.subr.mxu0 %v1485
        %1517 = vmatpush1.msra.mxu0 %v1484
        %1518 = vmatprep.subr.mxu0 %v1487
        %1519 = vmatpush1.msra.mxu0 %v1486
        %1520 = vmatprep.subr.mxu0 %v1489
        %1521 = vmatpush1.msra.mxu0 %v1488
        %1522 = vmatprep.subr.mxu0 %v1491
        %1523 = vmatpush1.msra.mxu0 %v1490
        %1524 = vmatprep.subr.mxu0 %v1493
        %1525 = vmatpush1.msra.mxu0 %v1492
        %1526 = vmatprep.subr.mxu0 %v1495
        %1527 = vmatpush1.msra.mxu0 %v1494
        %1528 = vmatprep.subr.mxu0 0.0
        %1529 = vmatpush1.msra.mxu0 0.0
        %1530 = vmatprep.subr.mxu0 0.0
        %1531 = vmatpush1.msra.mxu0 0.0
        %1532 = vmatprep.subr.mxu0 0.0
        %1533 = vmatpush1.msra.mxu0 0.0
        %1534 = vmatprep.subr.mxu0 0.0
        %1535 = vmatpush1.msra.mxu0 0.0
        %1536 = vmatprep.subr.mxu0 0.0
        %1537 = vmatpush1.msra.mxu0 0.0
        %1538 = vmatprep.subr.mxu0 0.0
        %1539 = vmatpush1.msra.mxu0 0.0
        %1540 = vmatprep.subr.mxu0 0.0
        %1541 = vmatpush1.msra.mxu0 0.0
        %1542 = vmatprep.subr.mxu0 0.0
        %1543 = vmatpush1.msra.mxu0 0.0
        %1544 = vmatprep.subr.mxu0 0.0
        %1545 = vmatpush1.msra.mxu0 0.0
        %1546 = vmatprep.subr.mxu0 0.0
        %1547 = vmatpush1.msra.mxu0 0.0
        %1548 = vmatprep.subr.mxu0 0.0
        %1549 = vmatpush1.msra.mxu0 0.0
        %1550 = vmatprep.subr.mxu0 0.0
        %1551 = vmatpush1.msra.mxu0 0.0
        %1552 = vmatprep.subr.mxu0 0.0
        %1553 = vmatpush1.msra.mxu0 0.0
        %1554 = vmatprep.subr.mxu0 0.0
        %1555 = vmatpush1.msra.mxu0 0.0
        %1556 = vmatprep.subr.mxu0 0.0
        %1557 = vmatpush1.msra.mxu0 0.0
        %1558 = vmatprep.subr.mxu0 0.0
        %1559 = vmatpush1.msra.mxu0 0.0
        %1560 = vmatprep.mubr.f32.mxu0 0.0
        %1561 = vmatmul.mubr.f32.gmra.mrb[0].mxu0 %v463
        %v1562 = vpop.f32.mrb[0].mxu0
        %v1563 = vadd.f32 0.0, %v1562
        %v1564 = vpop.f32.mrb[0].mxu0
        %v1565 = vadd.f32 0.0, %v1564
        %1566 = vdwg.mxu0
        %v1569 = vcombine.low %v1563, %v1565
        %v1571 = vunpack.c.l.s4 1966171168
        %v1572 = vunpack.c.0.s8 %v1571
        %v1573 = vlaneseq
        %v1574 = vshrl.u32 %v1573, 7
        %v1575 = vsub.s32 %v1572, %v1574
        %v1576 = vrot.slane %v1569, %v1575
        %v1578 = vunpack.c.l.s4 1966171168
        %v1579 = vunpack.c.0.s8 %v1578
        %v1580 = vlaneseq
        %v1581 = vshrl.u32 %v1580, 7
        %v1582 = vsub.s32 %v1579, %v1581
        %v1583 = vrot.slane %v1576, %v1582
        %v1585 = vadd.f32 %v1462, %v1583
        %s1586 = scalar_lea.vmem [#allocation9], 2304
        %v1587 = vld [vmem:[%s1586] sm:$0xff]
        %v1588 = vld [vmem:[%s1586 + $0x8] sm:$0xff]
        %v1589 = vld [vmem:[%s1586 + $0x10] sm:$0xff]
        %v1590 = vld [vmem:[%s1586 + $0x18] sm:$0xff]
        %v1591 = vld [vmem:[%s1586 + $0x20] sm:$0xff]
        %v1592 = vld [vmem:[%s1586 + $0x28] sm:$0xff]
        %v1593 = vld [vmem:[%s1586 + $0x30] sm:$0xff]
        %v1594 = vld [vmem:[%s1586 + $0x38] sm:$0xff]
        %v1595 = vld [vmem:[%s1586 + $0x40] sm:$0xff]
        %v1596 = vld [vmem:[%s1586 + $0x48] sm:$0xff]
        %v1597 = vld [vmem:[%s1586 + $0x50] sm:$0xff]
        %v1598 = vld [vmem:[%s1586 + $0x58] sm:$0xff]
        %v1599 = vld [vmem:[%s1586 + $0x60] sm:$0xff]
        %v1600 = vld [vmem:[%s1586 + $0x68] sm:$0xff]
        %v1601 = vld [vmem:[%s1586 + $0x70] sm:$0xff]
        %v1602 = vld [vmem:[%s1586 + $0x78] sm:$0xff]
        %v1603 = vld [vmem:[%s1586 + $0x80] sm:$0xff]
        %v1604 = vld [vmem:[%s1586 + $0x88] sm:$0xff]
        %v1605 = vld [vmem:[%s1586 + $0x90] sm:$0xff]
        %v1606 = vld [vmem:[%s1586 + $0x98] sm:$0xff]
        %v1607 = vld [vmem:[%s1586 + $0xa0] sm:$0xff]
        %v1608 = vld [vmem:[%s1586 + $0xa8] sm:$0xff]
        %v1609 = vld [vmem:[%s1586 + $0xb0] sm:$0xff]
        %v1610 = vld [vmem:[%s1586 + $0xb8] sm:$0xff]
        %v1611 = vld [vmem:[%s1586 + $0xc0] sm:$0xff]
        %v1612 = vld [vmem:[%s1586 + $0xc8] sm:$0xff]
        %v1613 = vld [vmem:[%s1586 + $0xd0] sm:$0xff]
        %v1614 = vld [vmem:[%s1586 + $0xd8] sm:$0xff]
        %v1615 = vld [vmem:[%s1586 + $0xe0] sm:$0xff]
        %v1616 = vld [vmem:[%s1586 + $0xe8] sm:$0xff]
        %v1617 = vld [vmem:[%s1586 + $0xf0] sm:$0xff]
        %v1618 = vld [vmem:[%s1586 + $0xf8] sm:$0xff]
        %v1620 = vrot.slane %v463, 1
        %1622 = vmatprep.subr.mxu0 %v1588
        %1623 = vmatpush1.msra.mxu0 %v1587
        %1624 = vmatprep.subr.mxu0 %v1590
        %1625 = vmatpush1.msra.mxu0 %v1589
        %1626 = vmatprep.subr.mxu0 %v1592
        %1627 = vmatpush1.msra.mxu0 %v1591
        %1628 = vmatprep.subr.mxu0 %v1594
        %1629 = vmatpush1.msra.mxu0 %v1593
        %1630 = vmatprep.subr.mxu0 %v1596
        %1631 = vmatpush1.msra.mxu0 %v1595
        %1632 = vmatprep.subr.mxu0 %v1598
        %1633 = vmatpush1.msra.mxu0 %v1597
        %1634 = vmatprep.subr.mxu0 %v1600
        %1635 = vmatpush1.msra.mxu0 %v1599
        %1636 = vmatprep.subr.mxu0 %v1602
        %1637 = vmatpush1.msra.mxu0 %v1601
        %1638 = vmatprep.subr.mxu0 %v1604
        %1639 = vmatpush1.msra.mxu0 %v1603
        %1640 = vmatprep.subr.mxu0 %v1606
        %1641 = vmatpush1.msra.mxu0 %v1605
        %1642 = vmatprep.subr.mxu0 %v1608
        %1643 = vmatpush1.msra.mxu0 %v1607
        %1644 = vmatprep.subr.mxu0 %v1610
        %1645 = vmatpush1.msra.mxu0 %v1609
        %1646 = vmatprep.subr.mxu0 %v1612
        %1647 = vmatpush1.msra.mxu0 %v1611
        %1648 = vmatprep.subr.mxu0 %v1614
        %1649 = vmatpush1.msra.mxu0 %v1613
        %1650 = vmatprep.subr.mxu0 %v1616
        %1651 = vmatpush1.msra.mxu0 %v1615
        %1652 = vmatprep.subr.mxu0 %v1618
        %1653 = vmatpush1.msra.mxu0 %v1617
        %1654 = vmatprep.subr.mxu0 0.0
        %1655 = vmatpush1.msra.mxu0 0.0
        %1656 = vmatprep.subr.mxu0 0.0
        %1657 = vmatpush1.msra.mxu0 0.0
        %1658 = vmatprep.subr.mxu0 0.0
        %1659 = vmatpush1.msra.mxu0 0.0
        %1660 = vmatprep.subr.mxu0 0.0
        %1661 = vmatpush1.msra.mxu0 0.0
        %1662 = vmatprep.subr.mxu0 0.0
        %1663 = vmatpush1.msra.mxu0 0.0
        %1664 = vmatprep.subr.mxu0 0.0
        %1665 = vmatpush1.msra.mxu0 0.0
        %1666 = vmatprep.subr.mxu0 0.0
        %1667 = vmatpush1.msra.mxu0 0.0
        %1668 = vmatprep.subr.mxu0 0.0
        %1669 = vmatpush1.msra.mxu0 0.0
        %1670 = vmatprep.subr.mxu0 0.0
        %1671 = vmatpush1.msra.mxu0 0.0
        %1672 = vmatprep.subr.mxu0 0.0
        %1673 = vmatpush1.msra.mxu0 0.0
        %1674 = vmatprep.subr.mxu0 0.0
        %1675 = vmatpush1.msra.mxu0 0.0
        %1676 = vmatprep.subr.mxu0 0.0
        %1677 = vmatpush1.msra.mxu0 0.0
        %1678 = vmatprep.subr.mxu0 0.0
        %1679 = vmatpush1.msra.mxu0 0.0
        %1680 = vmatprep.subr.mxu0 0.0
        %1681 = vmatpush1.msra.mxu0 0.0
        %1682 = vmatprep.subr.mxu0 0.0
        %1683 = vmatpush1.msra.mxu0 0.0
        %1684 = vmatprep.subr.mxu0 0.0
        %1685 = vmatpush1.msra.mxu0 0.0
        %1686 = vmatprep.mubr.f32.mxu0 0.0
        %1687 = vmatmul.mubr.f32.gmra.mrb[0].mxu0 %v1620
        %v1688 = vpop.f32.mrb[0].mxu0
        %v1689 = vadd.f32 0.0, %v1688
        %v1690 = vpop.f32.mrb[0].mxu0
        %v1691 = vadd.f32 0.0, %v1690
        %1692 = vdwg.mxu0
        %v1695 = vcombine.low %v1689, %v1691
        %v1697 = vunpack.c.l.s4 1966171168
        %v1698 = vunpack.c.0.s8 %v1697
        %v1699 = vlaneseq
        %v1700 = vshrl.u32 %v1699, 7
        %v1701 = vsub.s32 %v1698, %v1700
        %v1702 = vrot.slane %v1695, %v1701
        %v1704 = vunpack.c.l.s4 1966171168
        %v1705 = vunpack.c.0.s8 %v1704
        %v1706 = vlaneseq
        %v1707 = vshrl.u32 %v1706, 7
        %v1708 = vsub.s32 %v1705, %v1707
        %v1709 = vrot.slane %v1702, %v1708
        %v1711 = vadd.f32 %v1585, %v1709
        %s1712 = scalar_lea.vmem [#allocation9], 2560
        %v1713 = vld [vmem:[%s1712] sm:$0xff]
        %v1714 = vld [vmem:[%s1712 + $0x8] sm:$0xff]
        %v1715 = vld [vmem:[%s1712 + $0x10] sm:$0xff]
        %v1716 = vld [vmem:[%s1712 + $0x18] sm:$0xff]
        %v1717 = vld [vmem:[%s1712 + $0x20] sm:$0xff]
        %v1718 = vld [vmem:[%s1712 + $0x28] sm:$0xff]
        %v1719 = vld [vmem:[%s1712 + $0x30] sm:$0xff]
        %v1720 = vld [vmem:[%s1712 + $0x38] sm:$0xff]
        %v1721 = vld [vmem:[%s1712 + $0x40] sm:$0xff]
        %v1722 = vld [vmem:[%s1712 + $0x48] sm:$0xff]
        %v1723 = vld [vmem:[%s1712 + $0x50] sm:$0xff]
        %v1724 = vld [vmem:[%s1712 + $0x58] sm:$0xff]
        %v1725 = vld [vmem:[%s1712 + $0x60] sm:$0xff]
        %v1726 = vld [vmem:[%s1712 + $0x68] sm:$0xff]
        %v1727 = vld [vmem:[%s1712 + $0x70] sm:$0xff]
        %v1728 = vld [vmem:[%s1712 + $0x78] sm:$0xff]
        %v1729 = vld [vmem:[%s1712 + $0x80] sm:$0xff]
        %v1730 = vld [vmem:[%s1712 + $0x88] sm:$0xff]
        %v1731 = vld [vmem:[%s1712 + $0x90] sm:$0xff]
        %v1732 = vld [vmem:[%s1712 + $0x98] sm:$0xff]
        %v1733 = vld [vmem:[%s1712 + $0xa0] sm:$0xff]
        %v1734 = vld [vmem:[%s1712 + $0xa8] sm:$0xff]
        %v1735 = vld [vmem:[%s1712 + $0xb0] sm:$0xff]
        %v1736 = vld [vmem:[%s1712 + $0xb8] sm:$0xff]
        %v1737 = vld [vmem:[%s1712 + $0xc0] sm:$0xff]
        %v1738 = vld [vmem:[%s1712 + $0xc8] sm:$0xff]
        %v1739 = vld [vmem:[%s1712 + $0xd0] sm:$0xff]
        %v1740 = vld [vmem:[%s1712 + $0xd8] sm:$0xff]
        %v1741 = vld [vmem:[%s1712 + $0xe0] sm:$0xff]
        %v1742 = vld [vmem:[%s1712 + $0xe8] sm:$0xff]
        %v1743 = vld [vmem:[%s1712 + $0xf0] sm:$0xff]
        %v1744 = vld [vmem:[%s1712 + $0xf8] sm:$0xff]
        %v1745 = vrot.slane %v463, 2
        %1747 = vmatprep.subr.mxu0 %v1714
        %1748 = vmatpush1.msra.mxu0 %v1713
        %1749 = vmatprep.subr.mxu0 %v1716
        %1750 = vmatpush1.msra.mxu0 %v1715
        %1751 = vmatprep.subr.mxu0 %v1718
        %1752 = vmatpush1.msra.mxu0 %v1717
        %1753 = vmatprep.subr.mxu0 %v1720
        %1754 = vmatpush1.msra.mxu0 %v1719
        %1755 = vmatprep.subr.mxu0 %v1722
        %1756 = vmatpush1.msra.mxu0 %v1721
        %1757 = vmatprep.subr.mxu0 %v1724
        %1758 = vmatpush1.msra.mxu0 %v1723
        %1759 = vmatprep.subr.mxu0 %v1726
        %1760 = vmatpush1.msra.mxu0 %v1725
        %1761 = vmatprep.subr.mxu0 %v1728
        %1762 = vmatpush1.msra.mxu0 %v1727
        %1763 = vmatprep.subr.mxu0 %v1730
        %1764 = vmatpush1.msra.mxu0 %v1729
        %1765 = vmatprep.subr.mxu0 %v1732
        %1766 = vmatpush1.msra.mxu0 %v1731
        %1767 = vmatprep.subr.mxu0 %v1734
        %1768 = vmatpush1.msra.mxu0 %v1733
        %1769 = vmatprep.subr.mxu0 %v1736
        %1770 = vmatpush1.msra.mxu0 %v1735
        %1771 = vmatprep.subr.mxu0 %v1738
        %1772 = vmatpush1.msra.mxu0 %v1737
        %1773 = vmatprep.subr.mxu0 %v1740
        %1774 = vmatpush1.msra.mxu0 %v1739
        %1775 = vmatprep.subr.mxu0 %v1742
        %1776 = vmatpush1.msra.mxu0 %v1741
        %1777 = vmatprep.subr.mxu0 %v1744
        %1778 = vmatpush1.msra.mxu0 %v1743
        %1779 = vmatprep.subr.mxu0 0.0
        %1780 = vmatpush1.msra.mxu0 0.0
        %1781 = vmatprep.subr.mxu0 0.0
        %1782 = vmatpush1.msra.mxu0 0.0
        %1783 = vmatprep.subr.mxu0 0.0
        %1784 = vmatpush1.msra.mxu0 0.0
        %1785 = vmatprep.subr.mxu0 0.0
        %1786 = vmatpush1.msra.mxu0 0.0
        %1787 = vmatprep.subr.mxu0 0.0
        %1788 = vmatpush1.msra.mxu0 0.0
        %1789 = vmatprep.subr.mxu0 0.0
        %1790 = vmatpush1.msra.mxu0 0.0
        %1791 = vmatprep.subr.mxu0 0.0
        %1792 = vmatpush1.msra.mxu0 0.0
        %1793 = vmatprep.subr.mxu0 0.0
        %1794 = vmatpush1.msra.mxu0 0.0
        %1795 = vmatprep.subr.mxu0 0.0
        %1796 = vmatpush1.msra.mxu0 0.0
        %1797 = vmatprep.subr.mxu0 0.0
        %1798 = vmatpush1.msra.mxu0 0.0
        %1799 = vmatprep.subr.mxu0 0.0
        %1800 = vmatpush1.msra.mxu0 0.0
        %1801 = vmatprep.subr.mxu0 0.0
        %1802 = vmatpush1.msra.mxu0 0.0
        %1803 = vmatprep.subr.mxu0 0.0
        %1804 = vmatpush1.msra.mxu0 0.0
        %1805 = vmatprep.subr.mxu0 0.0
        %1806 = vmatpush1.msra.mxu0 0.0
        %1807 = vmatprep.subr.mxu0 0.0
        %1808 = vmatpush1.msra.mxu0 0.0
        %1809 = vmatprep.subr.mxu0 0.0
        %1810 = vmatpush1.msra.mxu0 0.0
        %1811 = vmatprep.mubr.f32.mxu0 0.0
        %1812 = vmatmul.mubr.f32.gmra.mrb[0].mxu0 %v1745
        %v1813 = vpop.f32.mrb[0].mxu0
        %v1814 = vadd.f32 0.0, %v1813
        %v1815 = vpop.f32.mrb[0].mxu0
        %v1816 = vadd.f32 0.0, %v1815
        %1817 = vdwg.mxu0
        %v1820 = vcombine.low %v1814, %v1816
        %v1822 = vunpack.c.l.s4 1966171168
        %v1823 = vunpack.c.0.s8 %v1822
        %v1824 = vlaneseq
        %v1825 = vshrl.u32 %v1824, 7
        %v1826 = vsub.s32 %v1823, %v1825
        %v1827 = vrot.slane %v1820, %v1826
        %v1829 = vunpack.c.l.s4 1966171168
        %v1830 = vunpack.c.0.s8 %v1829
        %v1831 = vlaneseq
        %v1832 = vshrl.u32 %v1831, 7
        %v1833 = vsub.s32 %v1830, %v1832
        %v1834 = vrot.slane %v1827, %v1833
        %v1836 = vadd.f32 %v1711, %v1834
        %s1837 = scalar_lea.vmem [#allocation9], 2816
        %v1838 = vld [vmem:[%s1837] sm:$0xff]
        %v1839 = vld [vmem:[%s1837 + $0x8] sm:$0xff]
        %v1840 = vld [vmem:[%s1837 + $0x10] sm:$0xff]
        %v1841 = vld [vmem:[%s1837 + $0x18] sm:$0xff]
        %v1842 = vld [vmem:[%s1837 + $0x20] sm:$0xff]
        %v1843 = vld [vmem:[%s1837 + $0x28] sm:$0xff]
        %v1844 = vld [vmem:[%s1837 + $0x30] sm:$0xff]
        %v1845 = vld [vmem:[%s1837 + $0x38] sm:$0xff]
        %v1846 = vld [vmem:[%s1837 + $0x40] sm:$0xff]
        %v1847 = vld [vmem:[%s1837 + $0x48] sm:$0xff]
        %v1848 = vld [vmem:[%s1837 + $0x50] sm:$0xff]
        %v1849 = vld [vmem:[%s1837 + $0x58] sm:$0xff]
        %v1850 = vld [vmem:[%s1837 + $0x60] sm:$0xff]
        %v1851 = vld [vmem:[%s1837 + $0x68] sm:$0xff]
        %v1852 = vld [vmem:[%s1837 + $0x70] sm:$0xff]
        %v1853 = vld [vmem:[%s1837 + $0x78] sm:$0xff]
        %v1854 = vld [vmem:[%s1837 + $0x80] sm:$0xff]
        %v1855 = vld [vmem:[%s1837 + $0x88] sm:$0xff]
        %v1856 = vld [vmem:[%s1837 + $0x90] sm:$0xff]
        %v1857 = vld [vmem:[%s1837 + $0x98] sm:$0xff]
        %v1858 = vld [vmem:[%s1837 + $0xa0] sm:$0xff]
        %v1859 = vld [vmem:[%s1837 + $0xa8] sm:$0xff]
        %v1860 = vld [vmem:[%s1837 + $0xb0] sm:$0xff]
        %v1861 = vld [vmem:[%s1837 + $0xb8] sm:$0xff]
        %v1862 = vld [vmem:[%s1837 + $0xc0] sm:$0xff]
        %v1863 = vld [vmem:[%s1837 + $0xc8] sm:$0xff]
        %v1864 = vld [vmem:[%s1837 + $0xd0] sm:$0xff]
        %v1865 = vld [vmem:[%s1837 + $0xd8] sm:$0xff]
        %v1866 = vld [vmem:[%s1837 + $0xe0] sm:$0xff]
        %v1867 = vld [vmem:[%s1837 + $0xe8] sm:$0xff]
        %v1868 = vld [vmem:[%s1837 + $0xf0] sm:$0xff]
        %v1869 = vld [vmem:[%s1837 + $0xf8] sm:$0xff]
        %v1870 = vrot.slane %v463, 3
        %1872 = vmatprep.subr.mxu0 %v1839
        %1873 = vmatpush1.msra.mxu0 %v1838
        %1874 = vmatprep.subr.mxu0 %v1841
        %1875 = vmatpush1.msra.mxu0 %v1840
        %1876 = vmatprep.subr.mxu0 %v1843
        %1877 = vmatpush1.msra.mxu0 %v1842
        %1878 = vmatprep.subr.mxu0 %v1845
        %1879 = vmatpush1.msra.mxu0 %v1844
        %1880 = vmatprep.subr.mxu0 %v1847
        %1881 = vmatpush1.msra.mxu0 %v1846
        %1882 = vmatprep.subr.mxu0 %v1849
        %1883 = vmatpush1.msra.mxu0 %v1848
        %1884 = vmatprep.subr.mxu0 %v1851
        %1885 = vmatpush1.msra.mxu0 %v1850
        %1886 = vmatprep.subr.mxu0 %v1853
        %1887 = vmatpush1.msra.mxu0 %v1852
        %1888 = vmatprep.subr.mxu0 %v1855
        %1889 = vmatpush1.msra.mxu0 %v1854
        %1890 = vmatprep.subr.mxu0 %v1857
        %1891 = vmatpush1.msra.mxu0 %v1856
        %1892 = vmatprep.subr.mxu0 %v1859
        %1893 = vmatpush1.msra.mxu0 %v1858
        %1894 = vmatprep.subr.mxu0 %v1861
        %1895 = vmatpush1.msra.mxu0 %v1860
        %1896 = vmatprep.subr.mxu0 %v1863
        %1897 = vmatpush1.msra.mxu0 %v1862
        %1898 = vmatprep.subr.mxu0 %v1865
        %1899 = vmatpush1.msra.mxu0 %v1864
        %1900 = vmatprep.subr.mxu0 %v1867
        %1901 = vmatpush1.msra.mxu0 %v1866
        %1902 = vmatprep.subr.mxu0 %v1869
        %1903 = vmatpush1.msra.mxu0 %v1868
        %1904 = vmatprep.subr.mxu0 0.0
        %1905 = vmatpush1.msra.mxu0 0.0
        %1906 = vmatprep.subr.mxu0 0.0
        %1907 = vmatpush1.msra.mxu0 0.0
        %1908 = vmatprep.subr.mxu0 0.0
        %1909 = vmatpush1.msra.mxu0 0.0
        %1910 = vmatprep.subr.mxu0 0.0
        %1911 = vmatpush1.msra.mxu0 0.0
        %1912 = vmatprep.subr.mxu0 0.0
        %1913 = vmatpush1.msra.mxu0 0.0
        %1914 = vmatprep.subr.mxu0 0.0
        %1915 = vmatpush1.msra.mxu0 0.0
        %1916 = vmatprep.subr.mxu0 0.0
        %1917 = vmatpush1.msra.mxu0 0.0
        %1918 = vmatprep.subr.mxu0 0.0
        %1919 = vmatpush1.msra.mxu0 0.0
        %1920 = vmatprep.subr.mxu0 0.0
        %1921 = vmatpush1.msra.mxu0 0.0
        %1922 = vmatprep.subr.mxu0 0.0
        %1923 = vmatpush1.msra.mxu0 0.0
        %1924 = vmatprep.subr.mxu0 0.0
        %1925 = vmatpush1.msra.mxu0 0.0
        %1926 = vmatprep.subr.mxu0 0.0
        %1927 = vmatpush1.msra.mxu0 0.0
        %1928 = vmatprep.subr.mxu0 0.0
        %1929 = vmatpush1.msra.mxu0 0.0
        %1930 = vmatprep.subr.mxu0 0.0
        %1931 = vmatpush1.msra.mxu0 0.0
        %1932 = vmatprep.subr.mxu0 0.0
        %1933 = vmatpush1.msra.mxu0 0.0
        %1934 = vmatprep.subr.mxu0 0.0
        %1935 = vmatpush1.msra.mxu0 0.0
        %1936 = vmatprep.mubr.f32.mxu0 0.0
        %1937 = vmatmul.mubr.f32.gmra.mrb[0].mxu0 %v1870
        %v1938 = vpop.f32.mrb[0].mxu0
        %v1939 = vadd.f32 0.0, %v1938
        %v1940 = vpop.f32.mrb[0].mxu0
        %v1941 = vadd.f32 0.0, %v1940
        %1942 = vdwg.mxu0
        %v1945 = vcombine.low %v1939, %v1941
        %v1947 = vunpack.c.l.s4 1966171168
        %v1948 = vunpack.c.0.s8 %v1947
        %v1949 = vlaneseq
        %v1950 = vshrl.u32 %v1949, 7
        %v1951 = vsub.s32 %v1948, %v1950
        %v1952 = vrot.slane %v1945, %v1951
        %v1954 = vunpack.c.l.s4 1966171168
        %v1955 = vunpack.c.0.s8 %v1954
        %v1956 = vlaneseq
        %v1957 = vshrl.u32 %v1956, 7
        %v1958 = vsub.s32 %v1955, %v1957
        %v1959 = vrot.slane %v1952, %v1958
        %v1961 = vadd.f32 %v1836, %v1959
        %s1962 = scalar_lea.vmem [#allocation9], 3072
        %v1963 = vld [vmem:[%s1962] sm:$0xff]
        %v1964 = vld [vmem:[%s1962 + $0x8] sm:$0xff]
        %v1965 = vld [vmem:[%s1962 + $0x10] sm:$0xff]
        %v1966 = vld [vmem:[%s1962 + $0x18] sm:$0xff]
        %v1967 = vld [vmem:[%s1962 + $0x20] sm:$0xff]
        %v1968 = vld [vmem:[%s1962 + $0x28] sm:$0xff]
        %v1969 = vld [vmem:[%s1962 + $0x30] sm:$0xff]
        %v1970 = vld [vmem:[%s1962 + $0x38] sm:$0xff]
        %v1971 = vld [vmem:[%s1962 + $0x40] sm:$0xff]
        %v1972 = vld [vmem:[%s1962 + $0x48] sm:$0xff]
        %v1973 = vld [vmem:[%s1962 + $0x50] sm:$0xff]
        %v1974 = vld [vmem:[%s1962 + $0x58] sm:$0xff]
        %v1975 = vld [vmem:[%s1962 + $0x60] sm:$0xff]
        %v1976 = vld [vmem:[%s1962 + $0x68] sm:$0xff]
        %v1977 = vld [vmem:[%s1962 + $0x70] sm:$0xff]
        %v1978 = vld [vmem:[%s1962 + $0x78] sm:$0xff]
        %v1979 = vld [vmem:[%s1962 + $0x80] sm:$0xff]
        %v1980 = vld [vmem:[%s1962 + $0x88] sm:$0xff]
        %v1981 = vld [vmem:[%s1962 + $0x90] sm:$0xff]
        %v1982 = vld [vmem:[%s1962 + $0x98] sm:$0xff]
        %v1983 = vld [vmem:[%s1962 + $0xa0] sm:$0xff]
        %v1984 = vld [vmem:[%s1962 + $0xa8] sm:$0xff]
        %v1985 = vld [vmem:[%s1962 + $0xb0] sm:$0xff]
        %v1986 = vld [vmem:[%s1962 + $0xb8] sm:$0xff]
        %v1987 = vld [vmem:[%s1962 + $0xc0] sm:$0xff]
        %v1988 = vld [vmem:[%s1962 + $0xc8] sm:$0xff]
        %v1989 = vld [vmem:[%s1962 + $0xd0] sm:$0xff]
        %v1990 = vld [vmem:[%s1962 + $0xd8] sm:$0xff]
        %v1991 = vld [vmem:[%s1962 + $0xe0] sm:$0xff]
        %v1992 = vld [vmem:[%s1962 + $0xe8] sm:$0xff]
        %v1993 = vld [vmem:[%s1962 + $0xf0] sm:$0xff]
        %v1994 = vld [vmem:[%s1962 + $0xf8] sm:$0xff]
        %v1995 = vrot.slane %v463, 4
        %1997 = vmatprep.subr.mxu0 %v1964
        %1998 = vmatpush1.msra.mxu0 %v1963
        %1999 = vmatprep.subr.mxu0 %v1966
        %2000 = vmatpush1.msra.mxu0 %v1965
        %2001 = vmatprep.subr.mxu0 %v1968
        %2002 = vmatpush1.msra.mxu0 %v1967
        %2003 = vmatprep.subr.mxu0 %v1970
        %2004 = vmatpush1.msra.mxu0 %v1969
        %2005 = vmatprep.subr.mxu0 %v1972
        %2006 = vmatpush1.msra.mxu0 %v1971
        %2007 = vmatprep.subr.mxu0 %v1974
        %2008 = vmatpush1.msra.mxu0 %v1973
        %2009 = vmatprep.subr.mxu0 %v1976
        %2010 = vmatpush1.msra.mxu0 %v1975
        %2011 = vmatprep.subr.mxu0 %v1978
        %2012 = vmatpush1.msra.mxu0 %v1977
        %2013 = vmatprep.subr.mxu0 %v1980
        %2014 = vmatpush1.msra.mxu0 %v1979
        %2015 = vmatprep.subr.mxu0 %v1982
        %2016 = vmatpush1.msra.mxu0 %v1981
        %2017 = vmatprep.subr.mxu0 %v1984
        %2018 = vmatpush1.msra.mxu0 %v1983
        %2019 = vmatprep.subr.mxu0 %v1986
        %2020 = vmatpush1.msra.mxu0 %v1985
        %2021 = vmatprep.subr.mxu0 %v1988
        %2022 = vmatpush1.msra.mxu0 %v1987
        %2023 = vmatprep.subr.mxu0 %v1990
        %2024 = vmatpush1.msra.mxu0 %v1989
        %2025 = vmatprep.subr.mxu0 %v1992
        %2026 = vmatpush1.msra.mxu0 %v1991
        %2027 = vmatprep.subr.mxu0 %v1994
        %2028 = vmatpush1.msra.mxu0 %v1993
        %2029 = vmatprep.subr.mxu0 0.0
        %2030 = vmatpush1.msra.mxu0 0.0
        %2031 = vmatprep.subr.mxu0 0.0
        %2032 = vmatpush1.msra.mxu0 0.0
        %2033 = vmatprep.subr.mxu0 0.0
        %2034 = vmatpush1.msra.mxu0 0.0
        %2035 = vmatprep.subr.mxu0 0.0
        %2036 = vmatpush1.msra.mxu0 0.0
        %2037 = vmatprep.subr.mxu0 0.0
        %2038 = vmatpush1.msra.mxu0 0.0
        %2039 = vmatprep.subr.mxu0 0.0
        %2040 = vmatpush1.msra.mxu0 0.0
        %2041 = vmatprep.subr.mxu0 0.0
        %2042 = vmatpush1.msra.mxu0 0.0
        %2043 = vmatprep.subr.mxu0 0.0
        %2044 = vmatpush1.msra.mxu0 0.0
        %2045 = vmatprep.subr.mxu0 0.0
        %2046 = vmatpush1.msra.mxu0 0.0
        %2047 = vmatprep.subr.mxu0 0.0
        %2048 = vmatpush1.msra.mxu0 0.0
        %2049 = vmatprep.subr.mxu0 0.0
        %2050 = vmatpush1.msra.mxu0 0.0
        %2051 = vmatprep.subr.mxu0 0.0
        %2052 = vmatpush1.msra.mxu0 0.0
        %2053 = vmatprep.subr.mxu0 0.0
        %2054 = vmatpush1.msra.mxu0 0.0
        %2055 = vmatprep.subr.mxu0 0.0
        %2056 = vmatpush1.msra.mxu0 0.0
        %2057 = vmatprep.subr.mxu0 0.0
        %2058 = vmatpush1.msra.mxu0 0.0
        %2059 = vmatprep.subr.mxu0 0.0
        %2060 = vmatpush1.msra.mxu0 0.0
        %2061 = vmatprep.mubr.f32.mxu0 0.0
        %2062 = vmatmul.mubr.f32.gmra.mrb[0].mxu0 %v1995
        %v2063 = vpop.f32.mrb[0].mxu0
        %v2064 = vadd.f32 0.0, %v2063
        %v2065 = vpop.f32.mrb[0].mxu0
        %v2066 = vadd.f32 0.0, %v2065
        %2067 = vdwg.mxu0
        %v2070 = vcombine.low %v2064, %v2066
        %v2072 = vunpack.c.l.s4 1966171168
        %v2073 = vunpack.c.0.s8 %v2072
        %v2074 = vlaneseq
        %v2075 = vshrl.u32 %v2074, 7
        %v2076 = vsub.s32 %v2073, %v2075
        %v2077 = vrot.slane %v2070, %v2076
        %v2079 = vunpack.c.l.s4 1966171168
        %v2080 = vunpack.c.0.s8 %v2079
        %v2081 = vlaneseq
        %v2082 = vshrl.u32 %v2081, 7
        %v2083 = vsub.s32 %v2080, %v2082
        %v2084 = vrot.slane %v2077, %v2083
        %v2086 = vadd.f32 %v1961, %v2084
        %s2087 = scalar_lea.vmem [#allocation9], 3328
        %v2088 = vld [vmem:[%s2087] sm:$0xff]
        %v2089 = vld [vmem:[%s2087 + $0x8] sm:$0xff]
        %v2090 = vld [vmem:[%s2087 + $0x10] sm:$0xff]
        %v2091 = vld [vmem:[%s2087 + $0x18] sm:$0xff]
        %v2092 = vld [vmem:[%s2087 + $0x20] sm:$0xff]
        %v2093 = vld [vmem:[%s2087 + $0x28] sm:$0xff]
        %v2094 = vld [vmem:[%s2087 + $0x30] sm:$0xff]
        %v2095 = vld [vmem:[%s2087 + $0x38] sm:$0xff]
        %v2096 = vld [vmem:[%s2087 + $0x40] sm:$0xff]
        %v2097 = vld [vmem:[%s2087 + $0x48] sm:$0xff]
        %v2098 = vld [vmem:[%s2087 + $0x50] sm:$0xff]
        %v2099 = vld [vmem:[%s2087 + $0x58] sm:$0xff]
        %v2100 = vld [vmem:[%s2087 + $0x60] sm:$0xff]
        %v2101 = vld [vmem:[%s2087 + $0x68] sm:$0xff]
        %v2102 = vld [vmem:[%s2087 + $0x70] sm:$0xff]
        %v2103 = vld [vmem:[%s2087 + $0x78] sm:$0xff]
        %v2104 = vld [vmem:[%s2087 + $0x80] sm:$0xff]
        %v2105 = vld [vmem:[%s2087 + $0x88] sm:$0xff]
        %v2106 = vld [vmem:[%s2087 + $0x90] sm:$0xff]
        %v2107 = vld [vmem:[%s2087 + $0x98] sm:$0xff]
        %v2108 = vld [vmem:[%s2087 + $0xa0] sm:$0xff]
        %v2109 = vld [vmem:[%s2087 + $0xa8] sm:$0xff]
        %v2110 = vld [vmem:[%s2087 + $0xb0] sm:$0xff]
        %v2111 = vld [vmem:[%s2087 + $0xb8] sm:$0xff]
        %v2112 = vld [vmem:[%s2087 + $0xc0] sm:$0xff]
        %v2113 = vld [vmem:[%s2087 + $0xc8] sm:$0xff]
        %v2114 = vld [vmem:[%s2087 + $0xd0] sm:$0xff]
        %v2115 = vld [vmem:[%s2087 + $0xd8] sm:$0xff]
        %v2116 = vld [vmem:[%s2087 + $0xe0] sm:$0xff]
        %v2117 = vld [vmem:[%s2087 + $0xe8] sm:$0xff]
        %v2118 = vld [vmem:[%s2087 + $0xf0] sm:$0xff]
        %v2119 = vld [vmem:[%s2087 + $0xf8] sm:$0xff]
        %v2120 = vrot.slane %v463, 5
        %2122 = vmatprep.subr.mxu0 %v2089
        %2123 = vmatpush1.msra.mxu0 %v2088
        %2124 = vmatprep.subr.mxu0 %v2091
        %2125 = vmatpush1.msra.mxu0 %v2090
        %2126 = vmatprep.subr.mxu0 %v2093
        %2127 = vmatpush1.msra.mxu0 %v2092
        %2128 = vmatprep.subr.mxu0 %v2095
        %2129 = vmatpush1.msra.mxu0 %v2094
        %2130 = vmatprep.subr.mxu0 %v2097
        %2131 = vmatpush1.msra.mxu0 %v2096
        %2132 = vmatprep.subr.mxu0 %v2099
        %2133 = vmatpush1.msra.mxu0 %v2098
        %2134 = vmatprep.subr.mxu0 %v2101
        %2135 = vmatpush1.msra.mxu0 %v2100
        %2136 = vmatprep.subr.mxu0 %v2103
        %2137 = vmatpush1.msra.mxu0 %v2102
        %2138 = vmatprep.subr.mxu0 %v2105
        %2139 = vmatpush1.msra.mxu0 %v2104
        %2140 = vmatprep.subr.mxu0 %v2107
        %2141 = vmatpush1.msra.mxu0 %v2106
        %2142 = vmatprep.subr.mxu0 %v2109
        %2143 = vmatpush1.msra.mxu0 %v2108
        %2144 = vmatprep.subr.mxu0 %v2111
        %2145 = vmatpush1.msra.mxu0 %v2110
        %2146 = vmatprep.subr.mxu0 %v2113
        %2147 = vmatpush1.msra.mxu0 %v2112
        %2148 = vmatprep.subr.mxu0 %v2115
        %2149 = vmatpush1.msra.mxu0 %v2114
        %2150 = vmatprep.subr.mxu0 %v2117
        %2151 = vmatpush1.msra.mxu0 %v2116
        %2152 = vmatprep.subr.mxu0 %v2119
        %2153 = vmatpush1.msra.mxu0 %v2118
        %2154 = vmatprep.subr.mxu0 0.0
        %2155 = vmatpush1.msra.mxu0 0.0
        %2156 = vmatprep.subr.mxu0 0.0
        %2157 = vmatpush1.msra.mxu0 0.0
        %2158 = vmatprep.subr.mxu0 0.0
        %2159 = vmatpush1.msra.mxu0 0.0
        %2160 = vmatprep.subr.mxu0 0.0
        %2161 = vmatpush1.msra.mxu0 0.0
        %2162 = vmatprep.subr.mxu0 0.0
        %2163 = vmatpush1.msra.mxu0 0.0
        %2164 = vmatprep.subr.mxu0 0.0
        %2165 = vmatpush1.msra.mxu0 0.0
        %2166 = vmatprep.subr.mxu0 0.0
        %2167 = vmatpush1.msra.mxu0 0.0
        %2168 = vmatprep.subr.mxu0 0.0
        %2169 = vmatpush1.msra.mxu0 0.0
        %2170 = vmatprep.subr.mxu0 0.0
        %2171 = vmatpush1.msra.mxu0 0.0
        %2172 = vmatprep.subr.mxu0 0.0
        %2173 = vmatpush1.msra.mxu0 0.0
        %2174 = vmatprep.subr.mxu0 0.0
        %2175 = vmatpush1.msra.mxu0 0.0
        %2176 = vmatprep.subr.mxu0 0.0
        %2177 = vmatpush1.msra.mxu0 0.0
        %2178 = vmatprep.subr.mxu0 0.0
        %2179 = vmatpush1.msra.mxu0 0.0
        %2180 = vmatprep.subr.mxu0 0.0
        %2181 = vmatpush1.msra.mxu0 0.0
        %2182 = vmatprep.subr.mxu0 0.0
        %2183 = vmatpush1.msra.mxu0 0.0
        %2184 = vmatprep.subr.mxu0 0.0
        %2185 = vmatpush1.msra.mxu0 0.0
        %2186 = vmatprep.mubr.f32.mxu0 0.0
        %2187 = vmatmul.mubr.f32.gmra.mrb[0].mxu0 %v2120
        %v2188 = vpop.f32.mrb[0].mxu0
        %v2189 = vadd.f32 0.0, %v2188
        %v2190 = vpop.f32.mrb[0].mxu0
        %v2191 = vadd.f32 0.0, %v2190
        %2192 = vdwg.mxu0
        %v2195 = vcombine.low %v2189, %v2191
        %v2197 = vunpack.c.l.s4 1966171168
        %v2198 = vunpack.c.0.s8 %v2197
        %v2199 = vlaneseq
        %v2200 = vshrl.u32 %v2199, 7
        %v2201 = vsub.s32 %v2198, %v2200
        %v2202 = vrot.slane %v2195, %v2201
        %v2204 = vunpack.c.l.s4 1966171168
        %v2205 = vunpack.c.0.s8 %v2204
        %v2206 = vlaneseq
        %v2207 = vshrl.u32 %v2206, 7
        %v2208 = vsub.s32 %v2205, %v2207
        %v2209 = vrot.slane %v2202, %v2208
        %v2211 = vadd.f32 %v2086, %v2209
        %s2212 = scalar_lea.vmem [#allocation9], 3584
        %v2213 = vld [vmem:[%s2212] sm:$0xff]
        %v2214 = vld [vmem:[%s2212 + $0x8] sm:$0xff]
        %v2215 = vld [vmem:[%s2212 + $0x10] sm:$0xff]
        %v2216 = vld [vmem:[%s2212 + $0x18] sm:$0xff]
        %v2217 = vld [vmem:[%s2212 + $0x20] sm:$0xff]
        %v2218 = vld [vmem:[%s2212 + $0x28] sm:$0xff]
        %v2219 = vld [vmem:[%s2212 + $0x30] sm:$0xff]
        %v2220 = vld [vmem:[%s2212 + $0x38] sm:$0xff]
        %v2221 = vld [vmem:[%s2212 + $0x40] sm:$0xff]
        %v2222 = vld [vmem:[%s2212 + $0x48] sm:$0xff]
        %v2223 = vld [vmem:[%s2212 + $0x50] sm:$0xff]
        %v2224 = vld [vmem:[%s2212 + $0x58] sm:$0xff]
        %v2225 = vld [vmem:[%s2212 + $0x60] sm:$0xff]
        %v2226 = vld [vmem:[%s2212 + $0x68] sm:$0xff]
        %v2227 = vld [vmem:[%s2212 + $0x70] sm:$0xff]
        %v2228 = vld [vmem:[%s2212 + $0x78] sm:$0xff]
        %v2229 = vld [vmem:[%s2212 + $0x80] sm:$0xff]
        %v2230 = vld [vmem:[%s2212 + $0x88] sm:$0xff]
        %v2231 = vld [vmem:[%s2212 + $0x90] sm:$0xff]
        %v2232 = vld [vmem:[%s2212 + $0x98] sm:$0xff]
        %v2233 = vld [vmem:[%s2212 + $0xa0] sm:$0xff]
        %v2234 = vld [vmem:[%s2212 + $0xa8] sm:$0xff]
        %v2235 = vld [vmem:[%s2212 + $0xb0] sm:$0xff]
        %v2236 = vld [vmem:[%s2212 + $0xb8] sm:$0xff]
        %v2237 = vld [vmem:[%s2212 + $0xc0] sm:$0xff]
        %v2238 = vld [vmem:[%s2212 + $0xc8] sm:$0xff]
        %v2239 = vld [vmem:[%s2212 + $0xd0] sm:$0xff]
        %v2240 = vld [vmem:[%s2212 + $0xd8] sm:$0xff]
        %v2241 = vld [vmem:[%s2212 + $0xe0] sm:$0xff]
        %v2242 = vld [vmem:[%s2212 + $0xe8] sm:$0xff]
        %v2243 = vld [vmem:[%s2212 + $0xf0] sm:$0xff]
        %v2244 = vld [vmem:[%s2212 + $0xf8] sm:$0xff]
        %v2245 = vrot.slane %v463, 6
        %2247 = vmatprep.subr.mxu0 %v2214
        %2248 = vmatpush1.msra.mxu0 %v2213
        %2249 = vmatprep.subr.mxu0 %v2216
        %2250 = vmatpush1.msra.mxu0 %v2215
        %2251 = vmatprep.subr.mxu0 %v2218
        %2252 = vmatpush1.msra.mxu0 %v2217
        %2253 = vmatprep.subr.mxu0 %v2220
        %2254 = vmatpush1.msra.mxu0 %v2219
        %2255 = vmatprep.subr.mxu0 %v2222
        %2256 = vmatpush1.msra.mxu0 %v2221
        %2257 = vmatprep.subr.mxu0 %v2224
        %2258 = vmatpush1.msra.mxu0 %v2223
        %2259 = vmatprep.subr.mxu0 %v2226
        %2260 = vmatpush1.msra.mxu0 %v2225
        %2261 = vmatprep.subr.mxu0 %v2228
        %2262 = vmatpush1.msra.mxu0 %v2227
        %2263 = vmatprep.subr.mxu0 %v2230
        %2264 = vmatpush1.msra.mxu0 %v2229
        %2265 = vmatprep.subr.mxu0 %v2232
        %2266 = vmatpush1.msra.mxu0 %v2231
        %2267 = vmatprep.subr.mxu0 %v2234
        %2268 = vmatpush1.msra.mxu0 %v2233
        %2269 = vmatprep.subr.mxu0 %v2236
        %2270 = vmatpush1.msra.mxu0 %v2235
        %2271 = vmatprep.subr.mxu0 %v2238
        %2272 = vmatpush1.msra.mxu0 %v2237
        %2273 = vmatprep.subr.mxu0 %v2240
        %2274 = vmatpush1.msra.mxu0 %v2239
        %2275 = vmatprep.subr.mxu0 %v2242
        %2276 = vmatpush1.msra.mxu0 %v2241
        %2277 = vmatprep.subr.mxu0 %v2244
        %2278 = vmatpush1.msra.mxu0 %v2243
        %2279 = vmatprep.subr.mxu0 0.0
        %2280 = vmatpush1.msra.mxu0 0.0
        %2281 = vmatprep.subr.mxu0 0.0
        %2282 = vmatpush1.msra.mxu0 0.0
        %2283 = vmatprep.subr.mxu0 0.0
        %2284 = vmatpush1.msra.mxu0 0.0
        %2285 = vmatprep.subr.mxu0 0.0
        %2286 = vmatpush1.msra.mxu0 0.0
        %2287 = vmatprep.subr.mxu0 0.0
        %2288 = vmatpush1.msra.mxu0 0.0
        %2289 = vmatprep.subr.mxu0 0.0
        %2290 = vmatpush1.msra.mxu0 0.0
        %2291 = vmatprep.subr.mxu0 0.0
        %2292 = vmatpush1.msra.mxu0 0.0
        %2293 = vmatprep.subr.mxu0 0.0
        %2294 = vmatpush1.msra.mxu0 0.0
        %2295 = vmatprep.subr.mxu0 0.0
        %2296 = vmatpush1.msra.mxu0 0.0
        %2297 = vmatprep.subr.mxu0 0.0
        %2298 = vmatpush1.msra.mxu0 0.0
        %2299 = vmatprep.subr.mxu0 0.0
        %2300 = vmatpush1.msra.mxu0 0.0
        %2301 = vmatprep.subr.mxu0 0.0
        %2302 = vmatpush1.msra.mxu0 0.0
        %2303 = vmatprep.subr.mxu0 0.0
        %2304 = vmatpush1.msra.mxu0 0.0
        %2305 = vmatprep.subr.mxu0 0.0
        %2306 = vmatpush1.msra.mxu0 0.0
        %2307 = vmatprep.subr.mxu0 0.0
        %2308 = vmatpush1.msra.mxu0 0.0
        %2309 = vmatprep.subr.mxu0 0.0
        %2310 = vmatpush1.msra.mxu0 0.0
        %2311 = vmatprep.mubr.f32.mxu0 0.0
        %2312 = vmatmul.mubr.f32.gmra.mrb[0].mxu0 %v2245
        %v2313 = vpop.f32.mrb[0].mxu0
        %v2314 = vadd.f32 0.0, %v2313
        %v2315 = vpop.f32.mrb[0].mxu0
        %v2316 = vadd.f32 0.0, %v2315
        %2317 = vdwg.mxu0
        %v2320 = vcombine.low %v2314, %v2316
        %v2322 = vunpack.c.l.s4 1966171168
        %v2323 = vunpack.c.0.s8 %v2322
        %v2324 = vlaneseq
        %v2325 = vshrl.u32 %v2324, 7
        %v2326 = vsub.s32 %v2323, %v2325
        %v2327 = vrot.slane %v2320, %v2326
        %v2329 = vunpack.c.l.s4 1966171168
        %v2330 = vunpack.c.0.s8 %v2329
        %v2331 = vlaneseq
        %v2332 = vshrl.u32 %v2331, 7
        %v2333 = vsub.s32 %v2330, %v2332
        %v2334 = vrot.slane %v2327, %v2333
        %v2336 = vadd.f32 %v2211, %v2334
        %s2337 = scalar_lea.vmem [#allocation9], 3840
        %v2338 = vld [vmem:[%s2337] sm:$0xff]
        %v2339 = vld [vmem:[%s2337 + $0x8] sm:$0xff]
        %v2340 = vld [vmem:[%s2337 + $0x10] sm:$0xff]
        %v2341 = vld [vmem:[%s2337 + $0x18] sm:$0xff]
        %v2342 = vld [vmem:[%s2337 + $0x20] sm:$0xff]
        %v2343 = vld [vmem:[%s2337 + $0x28] sm:$0xff]
        %v2344 = vld [vmem:[%s2337 + $0x30] sm:$0xff]
        %v2345 = vld [vmem:[%s2337 + $0x38] sm:$0xff]
        %v2346 = vld [vmem:[%s2337 + $0x40] sm:$0xff]
        %v2347 = vld [vmem:[%s2337 + $0x48] sm:$0xff]
        %v2348 = vld [vmem:[%s2337 + $0x50] sm:$0xff]
        %v2349 = vld [vmem:[%s2337 + $0x58] sm:$0xff]
        %v2350 = vld [vmem:[%s2337 + $0x60] sm:$0xff]
        %v2351 = vld [vmem:[%s2337 + $0x68] sm:$0xff]
        %v2352 = vld [vmem:[%s2337 + $0x70] sm:$0xff]
        %v2353 = vld [vmem:[%s2337 + $0x78] sm:$0xff]
        %v2354 = vld [vmem:[%s2337 + $0x80] sm:$0xff]
        %v2355 = vld [vmem:[%s2337 + $0x88] sm:$0xff]
        %v2356 = vld [vmem:[%s2337 + $0x90] sm:$0xff]
        %v2357 = vld [vmem:[%s2337 + $0x98] sm:$0xff]
        %v2358 = vld [vmem:[%s2337 + $0xa0] sm:$0xff]
        %v2359 = vld [vmem:[%s2337 + $0xa8] sm:$0xff]
        %v2360 = vld [vmem:[%s2337 + $0xb0] sm:$0xff]
        %v2361 = vld [vmem:[%s2337 + $0xb8] sm:$0xff]
        %v2362 = vld [vmem:[%s2337 + $0xc0] sm:$0xff]
        %v2363 = vld [vmem:[%s2337 + $0xc8] sm:$0xff]
        %v2364 = vld [vmem:[%s2337 + $0xd0] sm:$0xff]
        %v2365 = vld [vmem:[%s2337 + $0xd8] sm:$0xff]
        %v2366 = vld [vmem:[%s2337 + $0xe0] sm:$0xff]
        %v2367 = vld [vmem:[%s2337 + $0xe8] sm:$0xff]
        %v2368 = vld [vmem:[%s2337 + $0xf0] sm:$0xff]
        %v2369 = vld [vmem:[%s2337 + $0xf8] sm:$0xff]
        %v2370 = vrot.slane %v463, 7
        %2372 = vmatprep.subr.mxu0 %v2339
        %2373 = vmatpush1.msra.mxu0 %v2338
        %2374 = vmatprep.subr.mxu0 %v2341
        %2375 = vmatpush1.msra.mxu0 %v2340
        %2376 = vmatprep.subr.mxu0 %v2343
        %2377 = vmatpush1.msra.mxu0 %v2342
        %2378 = vmatprep.subr.mxu0 %v2345
        %2379 = vmatpush1.msra.mxu0 %v2344
        %2380 = vmatprep.subr.mxu0 %v2347
        %2381 = vmatpush1.msra.mxu0 %v2346
        %2382 = vmatprep.subr.mxu0 %v2349
        %2383 = vmatpush1.msra.mxu0 %v2348
        %2384 = vmatprep.subr.mxu0 %v2351
        %2385 = vmatpush1.msra.mxu0 %v2350
        %2386 = vmatprep.subr.mxu0 %v2353
        %2387 = vmatpush1.msra.mxu0 %v2352
        %2388 = vmatprep.subr.mxu0 %v2355
        %2389 = vmatpush1.msra.mxu0 %v2354
        %2390 = vmatprep.subr.mxu0 %v2357
        %2391 = vmatpush1.msra.mxu0 %v2356
        %2392 = vmatprep.subr.mxu0 %v2359
        %2393 = vmatpush1.msra.mxu0 %v2358
        %2394 = vmatprep.subr.mxu0 %v2361
        %2395 = vmatpush1.msra.mxu0 %v2360
        %2396 = vmatprep.subr.mxu0 %v2363
        %2397 = vmatpush1.msra.mxu0 %v2362
        %2398 = vmatprep.subr.mxu0 %v2365
        %2399 = vmatpush1.msra.mxu0 %v2364
        %2400 = vmatprep.subr.mxu0 %v2367
        %2401 = vmatpush1.msra.mxu0 %v2366
        %2402 = vmatprep.subr.mxu0 %v2369
        %2403 = vmatpush1.msra.mxu0 %v2368
        %2404 = vmatprep.subr.mxu0 0.0
        %2405 = vmatpush1.msra.mxu0 0.0
        %2406 = vmatprep.subr.mxu0 0.0
        %2407 = vmatpush1.msra.mxu0 0.0
        %2408 = vmatprep.subr.mxu0 0.0
        %2409 = vmatpush1.msra.mxu0 0.0
        %2410 = vmatprep.subr.mxu0 0.0
        %2411 = vmatpush1.msra.mxu0 0.0
        %2412 = vmatprep.subr.mxu0 0.0
        %2413 = vmatpush1.msra.mxu0 0.0
        %2414 = vmatprep.subr.mxu0 0.0
        %2415 = vmatpush1.msra.mxu0 0.0
        %2416 = vmatprep.subr.mxu0 0.0
        %2417 = vmatpush1.msra.mxu0 0.0
        %2418 = vmatprep.subr.mxu0 0.0
        %2419 = vmatpush1.msra.mxu0 0.0
        %2420 = vmatprep.subr.mxu0 0.0
        %2421 = vmatpush1.msra.mxu0 0.0
        %2422 = vmatprep.subr.mxu0 0.0
        %2423 = vmatpush1.msra.mxu0 0.0
        %2424 = vmatprep.subr.mxu0 0.0
        %2425 = vmatpush1.msra.mxu0 0.0
        %2426 = vmatprep.subr.mxu0 0.0
        %2427 = vmatpush1.msra.mxu0 0.0
        %2428 = vmatprep.subr.mxu0 0.0
        %2429 = vmatpush1.msra.mxu0 0.0
        %2430 = vmatprep.subr.mxu0 0.0
        %2431 = vmatpush1.msra.mxu0 0.0
        %2432 = vmatprep.subr.mxu0 0.0
        %2433 = vmatpush1.msra.mxu0 0.0
        %2434 = vmatprep.subr.mxu0 0.0
        %2435 = vmatpush1.msra.mxu0 0.0
        %2436 = vmatprep.mubr.f32.mxu0 0.0
        %2437 = vmatmul.mubr.f32.gmra.mrb[0].mxu0 %v2370
        %v2438 = vpop.f32.mrb[0].mxu0
        %v2439 = vadd.f32 0.0, %v2438
        %v2440 = vpop.f32.mrb[0].mxu0
        %v2441 = vadd.f32 0.0, %v2440
        %2442 = vdwg.mxu0
        %v2445 = vcombine.low %v2439, %v2441
        %v2447 = vunpack.c.l.s4 1966171168
        %v2448 = vunpack.c.0.s8 %v2447
        %v2449 = vlaneseq
        %v2450 = vshrl.u32 %v2449, 7
        %v2451 = vsub.s32 %v2448, %v2450
        %v2452 = vrot.slane %v2445, %v2451
        %v2454 = vunpack.c.l.s4 1966171168
        %v2455 = vunpack.c.0.s8 %v2454
        %v2456 = vlaneseq
        %v2457 = vshrl.u32 %v2456, 7
        %v2458 = vsub.s32 %v2455, %v2457
        %v2459 = vrot.slane %v2452, %v2458
        %v2461 = vadd.f32 %v2336, %v2459
        %v2462 = vlaneseq
        %vm2463 = vcmp.ge.s32.totalorder %v2462, 0
        %vm2464 = vcmp.lt.s32.totalorder %v2462, 256
        %vm2465 = vmand %vm2463, %vm2464
        %2466 = vst.msk [vmem:[#allocation2] sm:$0x3] %vm2465, %v2461
        // Predicated region
        $region65: #{tpu_custom_call.1} parent=39 // pred_check
          %p2467 = pneg %p325
        $region66: #{tpu_custom_call.1} parent=39 // pred_check_branch
          %2469 = sbr.rel (%p2467) target = $region68
        $region67: #{tpu_custom_call.1} parent=39 // pred_region
          %v2470 = vld [vmem:[#allocation11] sm:$0x3]
          %v2471 = vadd.f32 %v2461, %v2470
          %v2472 = vmul.f32 %v2471, 1.442695
          %v2473 = vpow.pop %v2472
          %v2474 = vadd.f32 %v2473, 1e-06
          %vm2475 = vcmp.lt.s32.totalorder %v2462, 128
          %vm2476 = vmand %vm2463, %vm2475
          %2477 = vst.msk [vmem:[%s321] sm:$0x1] %vm2476, %v2474
          %v2479 = vrot.slane %v2471, 1
          %v2481 = vxor.u32 %v2479, 2147483648
          %v2482 = vmul.f32 %v2481, 1.442695
          %v2483 = vpow.pop %v2482
          %v2484 = vadd.f32 %v2483, 1.0
          %v2485 = vrcp.pop %v2484
          %v2486 = vmul.f32 1.0, %v2485
          %v2487 = vmul.f32 %v2486, 0.99999
          %v2488 = vadd.f32 %v2487, 1e-06
          %2489 = vst.msk [vmem:[%s321 + $0x1] sm:$0x1] %vm2476, %v2488
        $region68: #{tpu_custom_call.1} parent=39 // pred_fallthru
          _
        %s2490 = sand.u32 %s161, 1
        %s2491 = scalar_lea.sflag [#allocation5], %s2490
        %s2492 = sand.u32 %s161, 1
        %s2493 = smul.addr %s2492, 2
        %s2494 = scalar_lea.vmem [#allocation12], %s2493
        // Predicated region
        $region69: #{tpu_custom_call.1} parent=39 // pred_check
          %p2495 = pneg %p171
        $region70: #{tpu_custom_call.1} parent=39 // pred_check_branch
          %2497 = sbr.rel (%p2495) target = $region72
        $region71: #{tpu_custom_call.1} parent=39 // pred_region
          %s2499 = ssub.s32 32, 32
          %2500 = vsyncadd %s2491, %s2499
          %s2501 = smul.addr %s28, 2
          %s2502 = smul.addr %s2501, 16
          %s2503 = scalar_lea.hbm %s5, %s2502
          %s2505 = sshll.u32 %s2494, 4
          %s2506 = int_to_ptr.vmem [resolvable:$true] %s2505
          %2508 = dma.vmem_to_hbm [thread:$0]  %s2506, 32, %s2503, %s2491
        $region72: #{tpu_custom_call.1} parent=39 // pred_fallthru
          _
      $region40: #{tpu_custom_call.1} parent=5 // pred_fallthru
        _
      %p2509 = scmp.le.s32.totalorder 2, %s19
      // Predicated region
      $region73: #{tpu_custom_call.1} parent=5 // pred_check
        %p2510 = pneg %p2509
      $region74: #{tpu_custom_call.1} parent=5 // pred_check_branch
        %2512 = sbr.rel (%p2510) target = $region76
      $region75: #{tpu_custom_call.1} parent=5 // pred_region
        %s2513 = ssub.s32 %s19, 2
        // Predicated region
        $region77: #{tpu_custom_call.1} parent=75 // pred_check
          %p2514 = pneg %p177
        $region78: #{tpu_custom_call.1} parent=75 // pred_check_branch
          %2516 = sbr.rel (%p2514) target = $region80
        $region79: #{tpu_custom_call.1} parent=75 // pred_region
          %s2517 = sand.u32 %s162, 1
          %s2518 = scalar_lea.sflag [#allocation5], %s2517
          %s2519 = sand.u32 %s162, 1
          %s2520 = smul.addr %s2519, 2
          %s2521 = scalar_lea.vmem [#allocation12], %s2520
          %2522 = dma.done %s2518, 32
        $region80: #{tpu_custom_call.1} parent=75 // pred_fallthru
          _
      $region76: #{tpu_custom_call.1} parent=5 // pred_fallthru
        _
    $region6: #{tpu_custom_call.1} parent=1 // loop_footer
      %s23 = sadd.s32 1, %s19
    $region7: #{tpu_custom_call.1} parent=1 // loop_footer_branch
      %18 = sbr.rel target = $region3
    $region8: #{tpu_custom_call.1} parent=1 // loop_exit
      _
    %2523 = vsyncpa [#allocation4], 1
    %s2524 = scalar_lea.sflag [#allocation4], 1
    %2525 = vsyncpa %s2524, 1
    %2526 = vsyncpa [#allocation7], 1
    %2527 = vsyncpa [#allocation10], 1
    %2528 = vsyncpa [#allocation5], 1
    %s2529 = scalar_lea.sflag [#allocation5], 1
    %2530 = vsyncpa %s2529, 1

</llo_original>
